<compile_context>
chip_gen: v6e
topology: v6e:2x2x1
jax: 0.10.0
libtpu: 0.0.40
codegen_flags: <defaults>
</compile_context>

<pallas_src>
import functools

import jax
import jax.numpy as jnp
from jax.experimental import pallas as pl
from jax.experimental.pallas import tpu as pltpu

_VMEM_LIMIT = 32 * 1024 * 1024  # safe on v5e/v6e (128 MiB) and v7x (64 MiB physical)


def _round_up(x, m):
    return (x + m - 1) // m * m


# --------------------------------------------------------------------------
# Pass 1: conv (single K=KH*KW*Cin matmul) + bias  [+ stats | + LeakyReLU]
# --------------------------------------------------------------------------
def _conv_kernel(p_ref, w_ref, b_ref, *out_refs, tile_rows, hw, cout_pad,
                 compute_stats, negative_slope):
    """p_ref: (1, tile_rows, K) bf16   w_ref: (K, COUT_PAD) bf16
       b_ref: (1, COUT_PAD) f32
       out_refs[0]: y (1, tile_rows, COUT_PAD) f32
       out_refs[1]: stats (1, 2, COUT_PAD) f32  (only if compute_stats)
    """
    y_ref = out_refs[0]
    t = pl.program_id(1)

    # One lane-dense MXU contraction: (tile_rows, K) @ (K, COUT_PAD) -> f32.
    acc = jnp.dot(p_ref[0], w_ref[...], preferred_element_type=jnp.float32)
    y = acc + b_ref[...]                          # (1, COUT_PAD) broadcasts

    if compute_stats:
        y_ref[0] = y                              # pre-norm activations

        # Mask rows that are only padding of the Hout*Wout axis.
        row = jax.lax.broadcasted_iota(jnp.int32, (tile_rows, 1), 0) + t * tile_rows
        valid = row < hw
        ym = jnp.where(valid, y, 0.0)

        s = jnp.sum(ym, axis=0, keepdims=True)        # (1, COUT_PAD)
        s2 = jnp.sum(ym * ym, axis=0, keepdims=True)  # (1, COUT_PAD)
        delta = jnp.concatenate([s, s2], axis=0).reshape(1, 2, cout_pad)

        stats_ref = out_refs[1]

        @pl.when(t == 0)
        def _():
            stats_ref[...] = jnp.zeros_like(stats_ref)

        stats_ref[...] = stats_ref[...] + delta       # resident accumulator
    else:
        # No normalization: fuse LeakyReLU here, single pass.
        y_ref[0] = jnp.where(y >= 0, y, negative_slope * y)


# --------------------------------------------------------------------------
# Pass 2: fused (y * scale + shift) + LeakyReLU  (in-place via aliasing)
# --------------------------------------------------------------------------
def _scale_act_kernel(y_ref, sc_ref, sh_ref, o_ref, *, negative_slope):
    z = y_ref[0] * sc_ref[0] + sh_ref[0]
    o_ref[0] = jnp.where(z >= 0, z, negative_slope * z)


# --------------------------------------------------------------------------
# Wrapper
# --------------------------------------------------------------------------
def cnl_forward(x, w, b, gamma, beta, *, stride=1, padding=0,
                normalization='bn', negative_slope=0.01, eps=1e-5,
                tile_rows=512):
    """x: (N, Cin, H, W) f32; w: (Cout, Cin, KH, KW); b/gamma/beta: (Cout,)"""
    # TODO(synk): 'ln' appears in the PyTorch docstring but the module defines no
    # branch for it (forward would crash); only 'bn' / 'in' / None are supported.
    N, Cin, H, W = x.shape
    Cout, _, KH, KW = w.shape
    Hout = (H + 2 * padding - KH) // stride + 1
    Wout = (W + 2 * padding - KW) // stride + 1
    HW = Hout * Wout
    Kdim = KH * KW * Cin
    COUT_PAD = _round_up(Cout, 128)

    tile = min(tile_rows, _round_up(HW, 8))
    HW_pad = _round_up(HW, tile)
    T = HW_pad // tile

    # ---- glue (layout only): NCHW -> NHWC, spatial pad, im2col in bf16 ----
    x_nhwc = jnp.transpose(x, (0, 2, 3, 1)).astype(jnp.bfloat16)
    x_sp = jnp.pad(x_nhwc, ((0, 0), (padding, padding), (padding, padding), (0, 0)))
    taps = []
    for kh in range(KH):
        for kw in range(KW):
            taps.append(x_sp[:, kh:kh + (Hout - 1) * stride + 1:stride,
                                kw:kw + (Wout - 1) * stride + 1:stride, :])
    patches = jnp.concatenate(taps, axis=-1).reshape(N, HW, Kdim)
    patches = jnp.pad(patches, ((0, 0), (0, HW_pad - HW), (0, 0)))

    # Weights -> (KH*KW*Cin, COUT_PAD) bf16, tap order matching `taps` above.
    w_mat = jnp.transpose(w, (2, 3, 1, 0)).reshape(Kdim, Cout)
    w_mat = jnp.pad(w_mat, ((0, 0), (0, COUT_PAD - Cout))).astype(jnp.bfloat16)
    b_row = jnp.pad(b.astype(jnp.float32), (0, COUT_PAD - Cout)).reshape(1, COUT_PAD)

    compute_stats = normalization in ('bn', 'in')

    kern1 = functools.partial(
        _conv_kernel, tile_rows=tile, hw=HW, cout_pad=COUT_PAD,
        compute_stats=compute_stats, negative_slope=negative_slope)

    out_shapes = [jax.ShapeDtypeStruct((N, HW_pad, COUT_PAD), jnp.float32)]
    out_specs = [pl.BlockSpec((1, tile, COUT_PAD), lambda n, t: (n, t, 0))]
    if compute_stats:
        out_shapes.append(jax.ShapeDtypeStruct((N, 2, COUT_PAD), jnp.float32))
        out_specs.append(pl.BlockSpec((1, 2, COUT_PAD), lambda n, t: (n, 0, 0)))

    results = pl.pallas_call(
        kern1,
        out_shape=tuple(out_shapes),
        grid=(N, T),
        in_specs=[
            pl.BlockSpec((1, tile, Kdim), lambda n, t: (n, t, 0)),   # im2col tile
            pl.BlockSpec((Kdim, COUT_PAD), lambda n, t: (0, 0)),     # weights (resident)
            pl.BlockSpec((1, COUT_PAD), lambda n, t: (0, 0)),        # bias
        ],
        out_specs=tuple(out_specs),
        compiler_params=pltpu.CompilerParams(
            dimension_semantics=("parallel", "arbitrary"),
            vmem_limit_bytes=_VMEM_LIMIT),
    )(patches, w_mat, b_row)

    if compute_stats:
        y_pre, stats = results

        gamma_p = jnp.pad(gamma.astype(jnp.float32), (0, COUT_PAD - Cout))
        beta_p = jnp.pad(beta.astype(jnp.float32), (0, COUT_PAD - Cout))

        if normalization == 'bn':
            # BatchNorm2d(track_running_stats=False): batch stats, biased var, affine.
            tot = jnp.sum(stats, axis=0)                       # (2, COUT_PAD)
            cnt = jnp.float32(N * HW)
            mean = tot[0] / cnt
            var = jnp.maximum(tot[1] / cnt - mean * mean, 0.0)
            inv = jax.lax.rsqrt(var + eps)
            scale = gamma_p * inv
            shift = beta_p - mean * scale
            scale = jnp.broadcast_to(scale.reshape(1, 1, COUT_PAD), (N, 1, COUT_PAD))
            shift = jnp.broadcast_to(shift.reshape(1, 1, COUT_PAD), (N, 1, COUT_PAD))
        else:  # 'in' — InstanceNorm2d (affine=False), per-sample stats over H*W.
            cnt = jnp.float32(HW)
            mean = stats[:, 0, :] / cnt                        # (N, COUT_PAD)
            var = jnp.maximum(stats[:, 1, :] / cnt - mean * mean, 0.0)
            inv = jax.lax.rsqrt(var + eps)
            scale = inv.reshape(N, 1, COUT_PAD)
            shift = (-mean * inv).reshape(N, 1, COUT_PAD)

        kern2 = functools.partial(_scale_act_kernel, negative_slope=negative_slope)
        y_act = pl.pallas_call(
            kern2,
            out_shape=jax.ShapeDtypeStruct((N, HW_pad, COUT_PAD), jnp.float32),
            grid=(N, T),
            in_specs=[
                pl.BlockSpec((1, tile, COUT_PAD), lambda n, t: (n, t, 0)),
                pl.BlockSpec((1, 1, COUT_PAD), lambda n, t: (n, 0, 0)),
                pl.BlockSpec((1, 1, COUT_PAD), lambda n, t: (n, 0, 0)),
            ],
            out_specs=pl.BlockSpec((1, tile, COUT_PAD), lambda n, t: (n, t, 0)),
            input_output_aliases={0: 0},     # normalize + activate in place
            compiler_params=pltpu.CompilerParams(
                dimension_semantics=("parallel", "parallel"),
                vmem_limit_bytes=_VMEM_LIMIT),
        )(y_pre, scale, shift)
    else:
        y_act = results[0] if isinstance(results, (tuple, list)) else results

    y = y_act[:, :HW, :Cout].reshape(N, Hout, Wout, Cout)
    return jnp.transpose(y, (0, 3, 1, 2))  # back to NCHW (module contract)


# --------------------------------------------------------------------------
# Pure-JAX reference (conv_in_dtype=bf16 matches the kernel's MXU precision)
# --------------------------------------------------------------------------
def _reference(x, w, b, gamma, beta, stride, padding, normalization,
               negative_slope=0.01, eps=1e-5, conv_in_dtype=jnp.float32):
    y = jax.lax.conv_general_dilated(
        x.astype(conv_in_dtype), w.astype(conv_in_dtype), (stride, stride),
        [(padding, padding), (padding, padding)],
        dimension_numbers=('NCHW', 'OIHW', 'NCHW'),
        preferred_element_type=jnp.float32)
    y = y + b.reshape(1, -1, 1, 1)
    if normalization == 'bn':
        mean = jnp.mean(y, axis=(0, 2, 3), keepdims=True)
        var = jnp.mean((y - mean) ** 2, axis=(0, 2, 3), keepdims=True)
        y = (y - mean) / jnp.sqrt(var + eps)
        y = y * gamma.reshape(1, -1, 1, 1) + beta.reshape(1, -1, 1, 1)
    elif normalization == 'in':
        mean = jnp.mean(y, axis=(2, 3), keepdims=True)
        var = jnp.mean((y - mean) ** 2, axis=(2, 3), keepdims=True)
        y = (y - mean) / jnp.sqrt(var + eps)
    return jnp.where(y >= 0, y, negative_slope * y)


if __name__ == "__main__":
    # CNL(in_channels=4, out_channels=8, kernel_size=3, stride=1, padding=1, normalization=...)
    N, Cin, H, W = 2, 4, 16, 16
    Cout, K = 8, 3
    stride, padding = 1, 1

    key = jax.random.PRNGKey(0)
    kx, kw_, kb = jax.random.split(key, 3)
    x = jax.random.normal(kx, (N, Cin, H, W), jnp.float32)
    w = jax.random.normal(kw_, (Cout, Cin, K, K), jnp.float32) * 0.1
    b = jax.random.normal(kb, (Cout,), jnp.float32) * 0.1
    gamma = jnp.ones((Cout,), jnp.float32)   # BN affine default init
    beta = jnp.zeros((Cout,), jnp.float32)

    for norm in ('bn', 'in', None):
        fwd = jax.jit(functools.partial(cnl_forward, stride=stride, padding=padding,
                                        normalization=norm))
        out = jax.block_until_ready(fwd(x, w, b, gamma, beta))
        assert out.shape == (N, Cout, H, W)

        # Tight check vs a reference that uses the same bf16 MXU operand precision.
        ref_matched = _reference(x, w, b, gamma, beta, stride, padding, norm,
                                 conv_in_dtype=jnp.bfloat16)
        err_m = float(jnp.max(jnp.abs(out - ref_matched)))
        assert err_m < 1e-3, f"[{norm}] mismatch vs matched-precision reference: {err_m}"

        # Loose sanity check vs the full-f32 reference (bf16 conv operands).
        ref_f32 = _reference(x, w, b, gamma, beta, stride, padding, norm,
                             conv_in_dtype=jnp.float32)
        err_f = float(jnp.max(jnp.abs(out - ref_f32)))
        assert err_f < 5e-2, f"[{norm}] mismatch vs f32 reference: {err_f}"

    print("KERNEL_OK")
</pallas_src>

<mosaic_0001>
module attributes {stable_mosaic.version = 11 : i64} {
  func.func @_conv_kernel(%arg0: i32, %arg1: i32, %arg2: memref<1x256x36xbf16, #tpu.memory_space<vmem>>, %arg3: memref<36x128xbf16, #tpu.memory_space<vmem>>, %arg4: memref<1x128xf32, #tpu.memory_space<vmem>>, %arg5: memref<1x256x128xf32, #tpu.memory_space<vmem>>, %arg6: memref<1x2x128xf32, #tpu.memory_space<vmem>>) attributes {dimension_semantics = [#tpu.dimension_semantics<parallel>, #tpu.dimension_semantics<arbitrary>], iteration_bounds = array<i64: 2, 1>, scalar_prefetch = 0 : i64, scratch_operands = 0 : i64, tpu.core_type = #tpu.core_type<tc>, window_params = [{transform_indices = @transform_0, window_bounds = array<i64: 1, 256, 36>}, {pipeline_mode = #tpu.pipeline_mode<synchronous>, transform_indices = @transform_1, window_bounds = array<i64: 36, 128>}, {pipeline_mode = #tpu.pipeline_mode<synchronous>, transform_indices = @transform_2, window_bounds = array<i64: 1, 128>}, {transform_indices = @transform_3, window_bounds = array<i64: 1, 256, 128>}, {transform_indices = @transform_4, window_bounds = array<i64: 1, 2, 128>}]} {
    %c0 = arith.constant 0 : index
    %c0_0 = arith.constant 0 : index
    %c0_1 = arith.constant 0 : index
    %0 = vector.load %arg2[%c0, %c0_0, %c0_1] : memref<1x256x36xbf16, #tpu.memory_space<vmem>>, vector<1x256x36xbf16>
    %1 = vector.shape_cast %0 : vector<1x256x36xbf16> to vector<256x36xbf16>
    %c0_2 = arith.constant 0 : index
    %c0_3 = arith.constant 0 : index
    %2 = vector.load %arg3[%c0_2, %c0_3] : memref<36x128xbf16, #tpu.memory_space<vmem>>, vector<36x128xbf16>
    %cst = arith.constant dense<0.000000e+00> : vector<256x128xf32>
    %3 = tpu.matmul %1, %2, %cst {dimension_numbers = #tpu.dot_dimension_numbers<[1], [0], [0], [1], [0, 0, 1, 1], [], []>} : vector<256x36xbf16>, vector<36x128xbf16>, vector<256x128xf32> -> vector<256x128xf32>
    %c0_4 = arith.constant 0 : index
    %c0_5 = arith.constant 0 : index
    %4 = vector.load %arg4[%c0_4, %c0_5] : memref<1x128xf32, #tpu.memory_space<vmem>>, vector<1x128xf32>
    %5 = vector.broadcast %4 : vector<1x128xf32> to vector<256x128xf32>
    %6 = arith.addf %3, %5 : vector<256x128xf32>
    %c0_6 = arith.constant 0 : index
    %c0_7 = arith.constant 0 : index
    %c0_8 = arith.constant 0 : index
    %7 = vector.load %arg5[%c0_6, %c0_7, %c0_8] : memref<1x256x128xf32, #tpu.memory_space<vmem>>, vector<1x256x128xf32>
    %8 = vector.shape_cast %7 : vector<1x256x128xf32> to vector<256x128xf32>
    %9 = vector.shape_cast %6 : vector<256x128xf32> to vector<1x256x128xf32>
    tpu.vector_store %arg5[%c0_6, %c0_7, %c0_8], %9 {strides = array<i32>} : memref<1x256x128xf32, #tpu.memory_space<vmem>>, vector<1x256x128xf32>,
    %10 = tpu.iota {dimensions = array<i32: 0>} : vector<256x1xi32>
    %c256_i32 = arith.constant 256 : i32
    %11 = arith.muli %arg1, %c256_i32 : i32
    %12 = vector.broadcast %11 : i32 to vector<256x1xi32>
    %13 = arith.addi %10, %12 : vector<256x1xi32>
    %c256_i32_9 = arith.constant 256 : i32
    %14 = vector.broadcast %c256_i32_9 : i32 to vector<256x1xi32>
    %15 = arith.cmpi slt, %13, %14 : vector<256x1xi32>
    %cst_10 = arith.constant 0.000000e+00 : f32
    %16 = vector.shape_cast %15 : vector<256x1xi1> to vector<256x1xi1>
    %17 = vector.broadcast %16 : vector<256x1xi1> to vector<256x128xi1>
    %18 = vector.broadcast %cst_10 : f32 to vector<256x128xf32>
    %19 = arith.select %17, %6, %18 : vector<256x128xi1>, vector<256x128xf32>
    %cst_11 = arith.constant dense<0.000000e+00> : vector<128xf32>
    %20 = vector.multi_reduction <add>, %19, %cst_11 [0] : vector<256x128xf32> to vector<128xf32>
    %21 = vector.shape_cast %20 : vector<128xf32> to vector<1x128xf32>
    %22 = arith.mulf %19, %19 : vector<256x128xf32>
    %cst_12 = arith.constant dense<0.000000e+00> : vector<128xf32>
    %23 = vector.multi_reduction <add>, %22, %cst_12 [0] : vector<256x128xf32> to vector<128xf32>
    %24 = vector.shape_cast %23 : vector<128xf32> to vector<1x128xf32>
    %25 = tpu.concatenate %21, %24 in 0 : vector<1x128xf32>, vector<1x128xf32> -> vector<2x128xf32>
    %26 = vector.shape_cast %25 : vector<2x128xf32> to vector<1x2x128xf32>
    %c0_i32 = arith.constant 0 : i32
    %27 = arith.cmpi eq, %arg1, %c0_i32 : i32
    %28 = arith.extui %27 : i1 to i32
    %c0_i32_13 = arith.constant 0 : i32
    %29 = arith.cmpi ne, %28, %c0_i32_13 : i32
    scf.if %29 {
      %cst_20 = arith.constant 0.000000e+00 : f32
      %33 = vector.broadcast %cst_20 : f32 to vector<1x2x128xf32>
      %c0_21 = arith.constant 0 : index
      %c0_22 = arith.constant 0 : index
      %c0_23 = arith.constant 0 : index
      %34 = vector.load %arg6[%c0_21, %c0_22, %c0_23] : memref<1x2x128xf32, #tpu.memory_space<vmem>>, vector<1x2x128xf32>
      tpu.vector_store %arg6[%c0_21, %c0_22, %c0_23], %33 {strides = array<i32>} : memref<1x2x128xf32, #tpu.memory_space<vmem>>, vector<1x2x128xf32>,
    } else {
    }
    %c0_14 = arith.constant 0 : index
    %c0_15 = arith.constant 0 : index
    %c0_16 = arith.constant 0 : index
    %30 = vector.load %arg6[%c0_14, %c0_15, %c0_16] : memref<1x2x128xf32, #tpu.memory_space<vmem>>, vector<1x2x128xf32>
    %31 = arith.addf %30, %26 : vector<1x2x128xf32>
    %c0_17 = arith.constant 0 : index
    %c0_18 = arith.constant 0 : index
    %c0_19 = arith.constant 0 : index
    %32 = vector.load %arg6[%c0_17, %c0_18, %c0_19] : memref<1x2x128xf32, #tpu.memory_space<vmem>>, vector<1x2x128xf32>
    tpu.vector_store %arg6[%c0_17, %c0_18, %c0_19], %31 {strides = array<i32>} : memref<1x2x128xf32, #tpu.memory_space<vmem>>, vector<1x2x128xf32>,
    return
  }
  func.func @transform_0(%arg0: i32, %arg1: i32) -> (i32, i32, i32) {
    %c0_i32 = arith.constant 0 : i32
    %c0_i32_0 = arith.constant 0 : i32
    return %arg0, %arg1, %c0_i32 : i32, i32, i32
  }
  func.func @transform_1(%arg0: i32, %arg1: i32) -> (i32, i32) {
    %c0_i32 = arith.constant 0 : i32
    %c0_i32_0 = arith.constant 0 : i32
    %c0_i32_1 = arith.constant 0 : i32
    return %c0_i32, %c0_i32_0 : i32, i32
  }
  func.func @transform_2(%arg0: i32, %arg1: i32) -> (i32, i32) {
    %c0_i32 = arith.constant 0 : i32
    %c0_i32_0 = arith.constant 0 : i32
    %c0_i32_1 = arith.constant 0 : i32
    return %c0_i32, %c0_i32_0 : i32, i32
  }
  func.func @transform_3(%arg0: i32, %arg1: i32) -> (i32, i32, i32) {
    %c0_i32 = arith.constant 0 : i32
    %c0_i32_0 = arith.constant 0 : i32
    return %arg0, %arg1, %c0_i32 : i32, i32, i32
  }
  func.func @transform_4(%arg0: i32, %arg1: i32) -> (i32, i32, i32) {
    %c0_i32 = arith.constant 0 : i32
    %c0_i32_0 = arith.constant 0 : i32
    %c0_i32_1 = arith.constant 0 : i32
    return %arg0, %c0_i32, %c0_i32_0 : i32, i32, i32
  }
}

module attributes {stable_mosaic.version = 11 : i64} {
  func.func @_scale_act_kernel(%arg0: i32, %arg1: i32, %arg2: memref<1x256x128xf32, #tpu.memory_space<vmem>>, %arg3: memref<1x1x128xf32, #tpu.memory_space<vmem>>, %arg4: memref<1x1x128xf32, #tpu.memory_space<vmem>>, %arg5: memref<1x256x128xf32, #tpu.memory_space<vmem>>) attributes {dimension_semantics = [#tpu.dimension_semantics<parallel>, #tpu.dimension_semantics<parallel>], iteration_bounds = array<i64: 2, 1>, scalar_prefetch = 0 : i64, scratch_operands = 0 : i64, tpu.core_type = #tpu.core_type<tc>, window_params = [{transform_indices = @transform_0, window_bounds = array<i64: 1, 256, 128>}, {transform_indices = @transform_1, window_bounds = array<i64: 1, 1, 128>}, {transform_indices = @transform_2, window_bounds = array<i64: 1, 1, 128>}, {transform_indices = @transform_3, window_bounds = array<i64: 1, 256, 128>}]} {
    %c0 = arith.constant 0 : index
    %c0_0 = arith.constant 0 : index
    %c0_1 = arith.constant 0 : index
    %0 = vector.load %arg2[%c0, %c0_0, %c0_1] : memref<1x256x128xf32, #tpu.memory_space<vmem>>, vector<1x256x128xf32>
    %1 = vector.shape_cast %0 : vector<1x256x128xf32> to vector<256x128xf32>
    %c0_2 = arith.constant 0 : index
    %c0_3 = arith.constant 0 : index
    %c0_4 = arith.constant 0 : index
    %2 = vector.load %arg3[%c0_2, %c0_3, %c0_4] : memref<1x1x128xf32, #tpu.memory_space<vmem>>, vector<1x1x128xf32>
    %3 = vector.shape_cast %2 : vector<1x1x128xf32> to vector<1x128xf32>
    %4 = vector.broadcast %3 : vector<1x128xf32> to vector<256x128xf32>
    %5 = arith.mulf %1, %4 : vector<256x128xf32>
    %c0_5 = arith.constant 0 : index
    %c0_6 = arith.constant 0 : index
    %c0_7 = arith.constant 0 : index
    %6 = vector.load %arg4[%c0_5, %c0_6, %c0_7] : memref<1x1x128xf32, #tpu.memory_space<vmem>>, vector<1x1x128xf32>
    %7 = vector.shape_cast %6 : vector<1x1x128xf32> to vector<1x128xf32>
    %8 = vector.broadcast %7 : vector<1x128xf32> to vector<256x128xf32>
    %9 = arith.addf %5, %8 : vector<256x128xf32>
    %cst = arith.constant 0.000000e+00 : f32
    %10 = vector.broadcast %cst : f32 to vector<256x128xf32>
    %11 = arith.cmpf oge, %9, %10 : vector<256x128xf32>
    %cst_8 = arith.constant 0.00999999977 : f32
    %12 = vector.broadcast %cst_8 : f32 to vector<256x128xf32>
    %13 = arith.mulf %12, %9 : vector<256x128xf32>
    %14 = arith.select %11, %9, %13 : vector<256x128xi1>, vector<256x128xf32>
    %c0_9 = arith.constant 0 : index
    %c0_10 = arith.constant 0 : index
    %c0_11 = arith.constant 0 : index
    %15 = vector.load %arg5[%c0_9, %c0_10, %c0_11] : memref<1x256x128xf32, #tpu.memory_space<vmem>>, vector<1x256x128xf32>
    %16 = vector.shape_cast %15 : vector<1x256x128xf32> to vector<256x128xf32>
    %17 = vector.shape_cast %14 : vector<256x128xf32> to vector<1x256x128xf32>
    tpu.vector_store %arg5[%c0_9, %c0_10, %c0_11], %17 {strides = array<i32>} : memref<1x256x128xf32, #tpu.memory_space<vmem>>, vector<1x256x128xf32>,
    return
  }
  func.func @transform_0(%arg0: i32, %arg1: i32) -> (i32, i32, i32) {
    %c0_i32 = arith.constant 0 : i32
    %c0_i32_0 = arith.constant 0 : i32
    return %arg0, %arg1, %c0_i32 : i32, i32, i32
  }
  func.func @transform_1(%arg0: i32, %arg1: i32) -> (i32, i32, i32) {
    %c0_i32 = arith.constant 0 : i32
    %c0_i32_0 = arith.constant 0 : i32
    %c0_i32_1 = arith.constant 0 : i32
    return %arg0, %c0_i32, %c0_i32_0 : i32, i32, i32
  }
  func.func @transform_2(%arg0: i32, %arg1: i32) -> (i32, i32, i32) {
    %c0_i32 = arith.constant 0 : i32
    %c0_i32_0 = arith.constant 0 : i32
    %c0_i32_1 = arith.constant 0 : i32
    return %arg0, %c0_i32, %c0_i32_0 : i32, i32, i32
  }
  func.func @transform_3(%arg0: i32, %arg1: i32) -> (i32, i32, i32) {
    %c0_i32 = arith.constant 0 : i32
    %c0_i32_0 = arith.constant 0 : i32
    return %arg0, %arg1, %c0_i32 : i32, i32, i32
  }
}

</mosaic_0001>

<llo_original>
// kernel: cnl_forward.3
$region0: #{cnl_forward.3}
  #allocation0 [shape = 'u32[]', space=smem, size = 0x4, offset = 0x4, fixed_abs, tag = 'smem constant byte address 0x4 - core index']
  #allocation1 [shape = 'u32[144,128]{1,0:T(1,128)}', space=vmem, size = 0x12000, scoped, tag = 'internal scratch']
  %s0 = inlined_call_operand.vmem [shape: f32[2,256,128], index: 0, kind: input, shape index: {}, may-alias: {0,3}]
  %s1 = inlined_call_operand.vmem [shape: f32[2,1,128], index: 1, kind: input, shape index: {}]
  %s2 = inlined_call_operand.vmem [shape: f32[2,1,128], index: 2, kind: input, shape index: {}]
  %s3 = inlined_call_operand.vmem [shape: f32[2,256,128], index: 3, kind: output, shape index: {}, may-alias: {0,3}]
  %s4 = sld [smem:[#allocation0]]
  $region45: #{cnl_forward.3} parent=0
    _
  %s6 = ssub.s32 1, %s4
  %s7 = scalar_select 0, %s6, %s4
  loop: start=0, step=1, limit=4
  $region2: #{cnl_forward.3} parent=0 // loop_pre_header
    _
  $region3: #{cnl_forward.3} parent=0 // loop_header
    %s9 = sphi 0, %s13
    %p10 = scmp.ge.s32.totalorder %s9, 4
    %s16 = sphi 0, %s28
    %s17 = sphi 0, %s24
    %s18 = sphi 0, %s16
    %s19 = sphi 0, %s17
    %s20 = sphi 0, %s18
    %s21 = sphi 0, %s19
    %s33 = sphi 0, %s35
    %s36 = sphi 0, %s33
    %s37 = sphi 0, %s36
    %s53 = sphi 0, %s37
    %s59 = sphi 0, %s61
    %s62 = sphi 0, %s59
    %s63 = sphi 0, %s62
    %s79 = sphi 0, %s63
    %s85 = sphi 0, %s87
    %s88 = sphi 0, %s85
    %s89 = sphi 0, %s88
    %s105 = sphi 0, %s89
    %s113 = sphi 0, %s115
    %s116 = sphi 0, %s113
    %s117 = sphi 0, %s116
    %s133 = sphi 0, %s117
  $region4: #{cnl_forward.3} parent=0 // loop_header_branch
    %12 = sbr.rel (%p10) target = $region8
  $region5: #{cnl_forward.3} parent=0 // loop_body
    %s14 = ssub.s32 %s9, 1
    %s15 = ssub.s32 %s9, 2
    %s22 = sadd.s32 1, %s17
    %p23 = scmp.ge.s32.totalorder %s22, 1
    %s24 = scalar_select %p23, 0, %s22
    %s25 = sadd.s32 1, %s16
    %s26 = scalar_select %p23, %s25, %s16
    %p27 = scmp.ge.s32.totalorder %s26, 2
    %s28 = scalar_select %p27, 0, %s26
    %s29 = ssub.s32 %s16, %s28
    %s30 = ssub.s32 %s17, %s24
    %s31 = sor.u32 %s29, %s30
    %p32 = scmp.eq.s32.totalorder %s31, 0
    %s34 = sadd.s32 %s33, 1
    %s35 = scalar_select %p32, %s33, %s34
    %p38 = pneg %p32
    %p39 = scmp.eq.s32.totalorder %s9, 1
    %p40 = por %p38, %p39
    %p41 = scmp.ne.s32.totalorder %s33, %s36
    %p42 = scmp.eq.s32.totalorder %s9, 0
    %p43 = por %p41, %p42
    %p44 = scmp.ne.s32.totalorder %s33, %s36
    %p45 = scmp.eq.s32.totalorder %s14, 1
    %p46 = por %p44, %p45
    %p47 = scmp.ne.s32.totalorder %s36, %s37
    %p48 = scmp.eq.s32.totalorder %s14, 0
    %p49 = por %p47, %p48
    %p50 = scmp.ne.s32.totalorder %s36, %s37
    %p51 = scmp.eq.s32.totalorder %s15, 1
    %p52 = por %p50, %p51
    %p54 = scmp.ne.s32.totalorder %s37, %s53
    %p55 = scmp.eq.s32.totalorder %s15, 0
    %p56 = por %p54, %p55
    %s57 = ssub.s32 %s16, %s28
    %p58 = scmp.eq.s32.totalorder %s57, 0
    %s60 = sadd.s32 %s59, 1
    %s61 = scalar_select %p58, %s59, %s60
    %p64 = pneg %p58
    %p65 = scmp.eq.s32.totalorder %s9, 1
    %p66 = por %p64, %p65
    %p67 = scmp.ne.s32.totalorder %s59, %s62
    %p68 = scmp.eq.s32.totalorder %s9, 0
    %p69 = por %p67, %p68
    %p70 = scmp.ne.s32.totalorder %s59, %s62
    %p71 = scmp.eq.s32.totalorder %s14, 1
    %p72 = por %p70, %p71
    %p73 = scmp.ne.s32.totalorder %s62, %s63
    %p74 = scmp.eq.s32.totalorder %s14, 0
    %p75 = por %p73, %p74
    %p76 = scmp.ne.s32.totalorder %s62, %s63
    %p77 = scmp.eq.s32.totalorder %s15, 1
    %p78 = por %p76, %p77
    %p80 = scmp.ne.s32.totalorder %s63, %s79
    %p81 = scmp.eq.s32.totalorder %s15, 0
    %p82 = por %p80, %p81
    %s83 = ssub.s32 %s16, %s28
    %p84 = scmp.eq.s32.totalorder %s83, 0
    %s86 = sadd.s32 %s85, 1
    %s87 = scalar_select %p84, %s85, %s86
    %p90 = pneg %p84
    %p91 = scmp.eq.s32.totalorder %s9, 1
    %p92 = por %p90, %p91
    %p93 = scmp.ne.s32.totalorder %s85, %s88
    %p94 = scmp.eq.s32.totalorder %s9, 0
    %p95 = por %p93, %p94
    %p96 = scmp.ne.s32.totalorder %s85, %s88
    %p97 = scmp.eq.s32.totalorder %s14, 1
    %p98 = por %p96, %p97
    %p99 = scmp.ne.s32.totalorder %s88, %s89
    %p100 = scmp.eq.s32.totalorder %s14, 0
    %p101 = por %p99, %p100
    %p102 = scmp.ne.s32.totalorder %s88, %s89
    %p103 = scmp.eq.s32.totalorder %s15, 1
    %p104 = por %p102, %p103
    %p106 = scmp.ne.s32.totalorder %s89, %s105
    %p107 = scmp.eq.s32.totalorder %s15, 0
    %p108 = por %p106, %p107
    %s109 = ssub.s32 %s16, %s28
    %s110 = ssub.s32 %s17, %s24
    %s111 = sor.u32 %s109, %s110
    %p112 = scmp.eq.s32.totalorder %s111, 0
    %s114 = sadd.s32 %s113, 1
    %s115 = scalar_select %p112, %s113, %s114
    %p118 = pneg %p112
    %p119 = scmp.eq.s32.totalorder %s9, 1
    %p120 = por %p118, %p119
    %p121 = scmp.ne.s32.totalorder %s113, %s116
    %p122 = scmp.eq.s32.totalorder %s9, 0
    %p123 = por %p121, %p122
    %p124 = scmp.ne.s32.totalorder %s113, %s116
    %p125 = scmp.eq.s32.totalorder %s14, 1
    %p126 = por %p124, %p125
    %p127 = scmp.ne.s32.totalorder %s116, %s117
    %p128 = scmp.eq.s32.totalorder %s14, 0
    %p129 = por %p127, %p128
    %p130 = scmp.ne.s32.totalorder %s116, %s117
    %p131 = scmp.eq.s32.totalorder %s15, 1
    %p132 = por %p130, %p131
    %p134 = scmp.ne.s32.totalorder %s117, %s133
    %p135 = scmp.eq.s32.totalorder %s15, 0
    %p136 = por %p134, %p135
    %p137 = scmp.le.s32.totalorder 1, %s9
    %p138 = scmp.lt.s32.totalorder %s9, 3
    %p139 = pnand %p137, %p138
    %p140 = pneg %p139
    // Predicated region
    $region9: #{cnl_forward.3} parent=5 // pred_check
      _
    $region10: #{cnl_forward.3} parent=5 // pred_check_branch
      %142 = sbr.rel (%p139) target = $region12
    $region11: #{cnl_forward.3} parent=5 // pred_region
      %s143 = ssub.s32 %s9, 1
    $region12: #{cnl_forward.3} parent=5 // pred_fallthru
      _
    %p144 = scmp.lt.s32.totalorder %s9, 2
    // Predicated region
    $region13: #{cnl_forward.3} parent=5 // pred_check
      %p145 = pneg %p144
    $region14: #{cnl_forward.3} parent=5 // pred_check_branch
      %147 = sbr.rel (%p145) target = $region16
    $region15: #{cnl_forward.3} parent=5 // pred_region
      // Predicated region
      $region17: #{cnl_forward.3} parent=15 // pred_check
        %p148 = pneg %p43
      $region18: #{cnl_forward.3} parent=15 // pred_check_branch
        %150 = sbr.rel (%p148) target = $region20
      $region19: #{cnl_forward.3} parent=15 // pred_region
        %s151 = smul.u32 32, %s17
        %p152 = scmp.lt.s32.totalorder %s16, 1
        %s153 = scalar_select %p152, %s16, 1
        %p154 = scmp.lt.s32.totalorder %s151, 31
        %s155 = scalar_select %p154, %s151, 31
        %s156 = smul.addr %s153, 32
        %s157 = sadd.s32 %s155, %s156
        %s158 = smul.addr %s157, 8
        %s159 = scalar_lea.vmem %s0, %s158
        %s160 = smul.u32 32, %s17
      $region20: #{cnl_forward.3} parent=15 // pred_fallthru
        _
      // Predicated region
      $region21: #{cnl_forward.3} parent=15 // pred_check
        %p161 = pneg %p69
      $region22: #{cnl_forward.3} parent=15 // pred_check_branch
        %163 = sbr.rel (%p161) target = $region24
      $region23: #{cnl_forward.3} parent=15 // pred_region
        %p164 = scmp.lt.s32.totalorder %s16, 1
        %s165 = scalar_select %p164, %s16, 1
        %s166 = scalar_lea.vmem %s1, %s165
      $region24: #{cnl_forward.3} parent=15 // pred_fallthru
        _
      // Predicated region
      $region25: #{cnl_forward.3} parent=15 // pred_check
        %p167 = pneg %p95
      $region26: #{cnl_forward.3} parent=15 // pred_check_branch
        %169 = sbr.rel (%p167) target = $region28
      $region27: #{cnl_forward.3} parent=15 // pred_region
        %p170 = scmp.lt.s32.totalorder %s16, 1
        %s171 = scalar_select %p170, %s16, 1
        %s172 = scalar_lea.vmem %s2, %s171
      $region28: #{cnl_forward.3} parent=15 // pred_fallthru
        _
    $region16: #{cnl_forward.3} parent=5 // pred_fallthru
      _
    %p173 = scmp.le.s32.totalorder 1, %s9
    %p174 = scmp.lt.s32.totalorder %s9, 3
    %p175 = pnand %p173, %p174
    %p176 = pneg %p175
    // Predicated region
    $region29: #{cnl_forward.3} parent=5 // pred_check
      _
    $region30: #{cnl_forward.3} parent=5 // pred_check_branch
      %178 = sbr.rel (%p175) target = $region32
    $region31: #{cnl_forward.3} parent=5 // pred_region
      %s179 = ssub.s32 %s9, 1
      %s180 = smul.u32 32, %s19
      %p181 = scmp.lt.s32.totalorder %s18, 1
      %s182 = scalar_select %p181, %s18, 1
      %p183 = scmp.lt.s32.totalorder %s180, 31
      %s184 = scalar_select %p183, %s180, 31
      %s185 = smul.addr %s182, 32
      %s186 = sadd.s32 %s184, %s185
      %s187 = smul.addr %s186, 8
      %s188 = scalar_lea.vmem %s0, %s187
      %p189 = pneg %p49
      %p190 = pneg %p46
      %p191 = scmp.lt.s32.totalorder %s18, 1
      %s192 = scalar_select %p191, %s18, 1
      %s193 = scalar_lea.vmem %s1, %s192
      %p194 = pneg %p75
      %p195 = pneg %p72
      %p196 = scmp.lt.s32.totalorder %s18, 1
      %s197 = scalar_select %p196, %s18, 1
      %s198 = scalar_lea.vmem %s2, %s197
      %p199 = pneg %p101
      %p200 = pneg %p98
      %p201 = pneg %p129
      %p202 = pneg %p126
      %s203 = smul.u32 32, %s19
      %p204 = scmp.lt.s32.totalorder %s18, 1
      %s205 = scalar_select %p204, %s18, 1
      %p206 = scmp.lt.s32.totalorder %s203, 31
      %s207 = scalar_select %p206, %s203, 31
      %s208 = smul.addr %s205, 32
      %s209 = sadd.s32 %s207, %s208
      %s210 = smul.addr %s209, 8
      %s211 = scalar_lea.vmem %s3, %s210
      %s212 = smul.u32 32, %s19
      %p213 = scmp.lt.s32.totalorder %s18, 1
      %s214 = scalar_select %p213, %s18, 1
      %p215 = scmp.lt.s32.totalorder %s212, 31
      %s216 = scalar_select %p215, %s212, 31
      %s217 = smul.addr %s214, 32
      %s218 = sadd.s32 %s216, %s217
      %s219 = smul.addr %s218, 8
      %s220 = scalar_lea.vmem %s0, %s219
      %s221 = smul.u32 32, %s19
      %p222 = scmp.lt.s32.totalorder %s18, 1
      %s223 = scalar_select %p222, %s18, 1
      %s224 = scalar_lea.vmem %s1, %s223
      %p225 = scmp.lt.s32.totalorder %s18, 1
      %s226 = scalar_select %p225, %s18, 1
      %s227 = scalar_lea.vmem %s2, %s226
      %s228 = smul.u32 32, %s19
      %p229 = scmp.lt.s32.totalorder %s18, 1
      %s230 = scalar_select %p229, %s18, 1
      %p231 = scmp.lt.s32.totalorder %s228, 31
      %s232 = scalar_select %p231, %s228, 31
      %s233 = smul.addr %s230, 32
      %s234 = sadd.s32 %s232, %s233
      %s235 = smul.addr %s234, 8
      %s236 = scalar_lea.vmem %s3, %s235
      %s237 = smul.u32 32, %s19
      %v238 = vld [vmem:[%s220] sm:$0xff]
      %v239 = vld [vmem:[%s220 + $0x8] sm:$0xff]
      %v240 = vld [vmem:[%s220 + $0x10] sm:$0xff]
      %v241 = vld [vmem:[%s220 + $0x18] sm:$0xff]
      %v242 = vld [vmem:[%s220 + $0x20] sm:$0xff]
      %v243 = vld [vmem:[%s220 + $0x28] sm:$0xff]
      %v244 = vld [vmem:[%s220 + $0x30] sm:$0xff]
      %v245 = vld [vmem:[%s220 + $0x38] sm:$0xff]
      %v246 = vld [vmem:[%s220 + $0x40] sm:$0xff]
      %v247 = vld [vmem:[%s220 + $0x48] sm:$0xff]
      %v248 = vld [vmem:[%s220 + $0x50] sm:$0xff]
      %v249 = vld [vmem:[%s220 + $0x58] sm:$0xff]
      %v250 = vld [vmem:[%s220 + $0x60] sm:$0xff]
      %v251 = vld [vmem:[%s220 + $0x68] sm:$0xff]
      %v252 = vld [vmem:[%s220 + $0x70] sm:$0xff]
      %v253 = vld [vmem:[%s220 + $0x78] sm:$0xff]
      %v254 = vld [vmem:[%s220 + $0x80] sm:$0xff]
      %v255 = vld [vmem:[%s220 + $0x88] sm:$0xff]
      %v256 = vld [vmem:[%s220 + $0x90] sm:$0xff]
      %v257 = vld [vmem:[%s220 + $0x98] sm:$0xff]
      %v258 = vld [vmem:[%s220 + $0xa0] sm:$0xff]
      %v259 = vld [vmem:[%s220 + $0xa8] sm:$0xff]
      %v260 = vld [vmem:[%s220 + $0xb0] sm:$0xff]
      %v261 = vld [vmem:[%s220 + $0xb8] sm:$0xff]
      %v262 = vld [vmem:[%s220 + $0xc0] sm:$0xff]
      %v263 = vld [vmem:[%s220 + $0xc8] sm:$0xff]
      %v264 = vld [vmem:[%s220 + $0xd0] sm:$0xff]
      %v265 = vld [vmem:[%s220 + $0xd8] sm:$0xff]
      %v266 = vld [vmem:[%s220 + $0xe0] sm:$0xff]
      %v267 = vld [vmem:[%s220 + $0xe8] sm:$0xff]
      %v268 = vld [vmem:[%s220 + $0xf0] sm:$0xff]
      %v269 = vld [vmem:[%s220 + $0xf8] sm:$0xff]
      %v270 = vld [vmem:[%s224] sm:$0x1]
      %v272 = vlaneseq
      %v273 = vshrl.u32 %v272, 7
      %v274 = vsub.s32 0, %v273
      %v275 = vrot.slane %v270, %v274
      %v277 = vmul.f32 %v238, %v275
      %v278 = vmul.f32 %v239, %v275
      %v279 = vmul.f32 %v240, %v275
      %v280 = vmul.f32 %v241, %v275
      %v281 = vmul.f32 %v242, %v275
      %v282 = vmul.f32 %v243, %v275
      %v283 = vmul.f32 %v244, %v275
      %v284 = vmul.f32 %v245, %v275
      %v285 = vmul.f32 %v246, %v275
      %v286 = vmul.f32 %v247, %v275
      %v287 = vmul.f32 %v248, %v275
      %v288 = vmul.f32 %v249, %v275
      %v289 = vmul.f32 %v250, %v275
      %v290 = vmul.f32 %v251, %v275
      %v291 = vmul.f32 %v252, %v275
      %v292 = vmul.f32 %v253, %v275
      %v293 = vmul.f32 %v254, %v275
      %v294 = vmul.f32 %v255, %v275
      %v295 = vmul.f32 %v256, %v275
      %v296 = vmul.f32 %v257, %v275
      %v297 = vmul.f32 %v258, %v275
      %v298 = vmul.f32 %v259, %v275
      %v299 = vmul.f32 %v260, %v275
      %v300 = vmul.f32 %v261, %v275
      %v301 = vmul.f32 %v262, %v275
      %v302 = vmul.f32 %v263, %v275
      %v303 = vmul.f32 %v264, %v275
      %v304 = vmul.f32 %v265, %v275
      %v305 = vmul.f32 %v266, %v275
      %v306 = vmul.f32 %v267, %v275
      %v307 = vmul.f32 %v268, %v275
      %v308 = vmul.f32 %v269, %v275
      %v309 = vld [vmem:[%s227] sm:$0x1]
      %v311 = vlaneseq
      %v312 = vshrl.u32 %v311, 7
      %v313 = vsub.s32 0, %v312
      %v314 = vrot.slane %v309, %v313
      %v316 = vadd.f32 %v277, %v314
      %v317 = vadd.f32 %v278, %v314
      %v318 = vadd.f32 %v279, %v314
      %v319 = vadd.f32 %v280, %v314
      %v320 = vadd.f32 %v281, %v314
      %v321 = vadd.f32 %v282, %v314
      %v322 = vadd.f32 %v283, %v314
      %v323 = vadd.f32 %v284, %v314
      %v324 = vadd.f32 %v285, %v314
      %v325 = vadd.f32 %v286, %v314
      %v326 = vadd.f32 %v287, %v314
      %v327 = vadd.f32 %v288, %v314
      %v328 = vadd.f32 %v289, %v314
      %v329 = vadd.f32 %v290, %v314
      %v330 = vadd.f32 %v291, %v314
      %v331 = vadd.f32 %v292, %v314
      %v332 = vadd.f32 %v293, %v314
      %v333 = vadd.f32 %v294, %v314
      %v334 = vadd.f32 %v295, %v314
      %v335 = vadd.f32 %v296, %v314
      %v336 = vadd.f32 %v297, %v314
      %v337 = vadd.f32 %v298, %v314
      %v338 = vadd.f32 %v299, %v314
      %v339 = vadd.f32 %v300, %v314
      %v340 = vadd.f32 %v301, %v314
      %v341 = vadd.f32 %v302, %v314
      %v342 = vadd.f32 %v303, %v314
      %v343 = vadd.f32 %v304, %v314
      %v344 = vadd.f32 %v305, %v314
      %v345 = vadd.f32 %v306, %v314
      %v346 = vadd.f32 %v307, %v314
      %v347 = vadd.f32 %v308, %v314
      %vm348 = vcmp.ge.f32.partialorder %v316, 0.0
      %vm349 = vcmp.ge.f32.partialorder %v317, 0.0
      %vm350 = vcmp.ge.f32.partialorder %v318, 0.0
      %vm351 = vcmp.ge.f32.partialorder %v319, 0.0
      %vm352 = vcmp.ge.f32.partialorder %v320, 0.0
      %vm353 = vcmp.ge.f32.partialorder %v321, 0.0
      %vm354 = vcmp.ge.f32.partialorder %v322, 0.0
      %vm355 = vcmp.ge.f32.partialorder %v323, 0.0
      %vm356 = vcmp.ge.f32.partialorder %v324, 0.0
      %vm357 = vcmp.ge.f32.partialorder %v325, 0.0
      %vm358 = vcmp.ge.f32.partialorder %v326, 0.0
      %vm359 = vcmp.ge.f32.partialorder %v327, 0.0
      %vm360 = vcmp.ge.f32.partialorder %v328, 0.0
      %vm361 = vcmp.ge.f32.partialorder %v329, 0.0
      %vm362 = vcmp.ge.f32.partialorder %v330, 0.0
      %vm363 = vcmp.ge.f32.partialorder %v331, 0.0
      %vm364 = vcmp.ge.f32.partialorder %v332, 0.0
      %vm365 = vcmp.ge.f32.partialorder %v333, 0.0
      %vm366 = vcmp.ge.f32.partialorder %v334, 0.0
      %vm367 = vcmp.ge.f32.partialorder %v335, 0.0
      %vm368 = vcmp.ge.f32.partialorder %v336, 0.0
      %vm369 = vcmp.ge.f32.partialorder %v337, 0.0
      %vm370 = vcmp.ge.f32.partialorder %v338, 0.0
      %vm371 = vcmp.ge.f32.partialorder %v339, 0.0
      %vm372 = vcmp.ge.f32.partialorder %v340, 0.0
      %vm373 = vcmp.ge.f32.partialorder %v341, 0.0
      %vm374 = vcmp.ge.f32.partialorder %v342, 0.0
      %vm375 = vcmp.ge.f32.partialorder %v343, 0.0
      %vm376 = vcmp.ge.f32.partialorder %v344, 0.0
      %vm377 = vcmp.ge.f32.partialorder %v345, 0.0
      %vm378 = vcmp.ge.f32.partialorder %v346, 0.0
      %vm379 = vcmp.ge.f32.partialorder %v347, 0.0
      %v380 = vmul.f32 %v316, 0.01
      %v381 = vmul.f32 %v317, 0.01
      %v382 = vmul.f32 %v318, 0.01
      %v383 = vmul.f32 %v319, 0.01
      %v384 = vmul.f32 %v320, 0.01
      %v385 = vmul.f32 %v321, 0.01
      %v386 = vmul.f32 %v322, 0.01
      %v387 = vmul.f32 %v323, 0.01
      %v388 = vmul.f32 %v324, 0.01
      %v389 = vmul.f32 %v325, 0.01
      %v390 = vmul.f32 %v326, 0.01
      %v391 = vmul.f32 %v327, 0.01
      %v392 = vmul.f32 %v328, 0.01
      %v393 = vmul.f32 %v329, 0.01
      %v394 = vmul.f32 %v330, 0.01
      %v395 = vmul.f32 %v331, 0.01
      %v396 = vmul.f32 %v332, 0.01
      %v397 = vmul.f32 %v333, 0.01
      %v398 = vmul.f32 %v334, 0.01
      %v399 = vmul.f32 %v335, 0.01
      %v400 = vmul.f32 %v336, 0.01
      %v401 = vmul.f32 %v337, 0.01
      %v402 = vmul.f32 %v338, 0.01
      %v403 = vmul.f32 %v339, 0.01
      %v404 = vmul.f32 %v340, 0.01
      %v405 = vmul.f32 %v341, 0.01
      %v406 = vmul.f32 %v342, 0.01
      %v407 = vmul.f32 %v343, 0.01
      %v408 = vmul.f32 %v344, 0.01
      %v409 = vmul.f32 %v345, 0.01
      %v410 = vmul.f32 %v346, 0.01
      %v411 = vmul.f32 %v347, 0.01
      %v412 = vsel %vm348, %v316, %v380
      %v413 = vsel %vm349, %v317, %v381
      %v414 = vsel %vm350, %v318, %v382
      %v415 = vsel %vm351, %v319, %v383
      %v416 = vsel %vm352, %v320, %v384
      %v417 = vsel %vm353, %v321, %v385
      %v418 = vsel %vm354, %v322, %v386
      %v419 = vsel %vm355, %v323, %v387
      %v420 = vsel %vm356, %v324, %v388
      %v421 = vsel %vm357, %v325, %v389
      %v422 = vsel %vm358, %v326, %v390
      %v423 = vsel %vm359, %v327, %v391
      %v424 = vsel %vm360, %v328, %v392
      %v425 = vsel %vm361, %v329, %v393
      %v426 = vsel %vm362, %v330, %v394
      %v427 = vsel %vm363, %v331, %v395
      %v428 = vsel %vm364, %v332, %v396
      %v429 = vsel %vm365, %v333, %v397
      %v430 = vsel %vm366, %v334, %v398
      %v431 = vsel %vm367, %v335, %v399
      %v432 = vsel %vm368, %v336, %v400
      %v433 = vsel %vm369, %v337, %v401
      %v434 = vsel %vm370, %v338, %v402
      %v435 = vsel %vm371, %v339, %v403
      %v436 = vsel %vm372, %v340, %v404
      %v437 = vsel %vm373, %v341, %v405
      %v438 = vsel %vm374, %v342, %v406
      %v439 = vsel %vm375, %v343, %v407
      %v440 = vsel %vm376, %v344, %v408
      %v441 = vsel %vm377, %v345, %v409
      %v442 = vsel %vm378, %v346, %v410
      %v443 = vsel %vm379, %v347, %v411
      %444 = vst [vmem:[%s236] sm:$0xff] %v412
      %445 = vst [vmem:[%s236 + $0x8] sm:$0xff] %v413
      %446 = vst [vmem:[%s236 + $0x10] sm:$0xff] %v414
      %447 = vst [vmem:[%s236 + $0x18] sm:$0xff] %v415
      %448 = vst [vmem:[%s236 + $0x20] sm:$0xff] %v416
      %449 = vst [vmem:[%s236 + $0x28] sm:$0xff] %v417
      %450 = vst [vmem:[%s236 + $0x30] sm:$0xff] %v418
      %451 = vst [vmem:[%s236 + $0x38] sm:$0xff] %v419
      %452 = vst [vmem:[%s236 + $0x40] sm:$0xff] %v420
      %453 = vst [vmem:[%s236 + $0x48] sm:$0xff] %v421
      %454 = vst [vmem:[%s236 + $0x50] sm:$0xff] %v422
      %455 = vst [vmem:[%s236 + $0x58] sm:$0xff] %v423
      %456 = vst [vmem:[%s236 + $0x60] sm:$0xff] %v424
      %457 = vst [vmem:[%s236 + $0x68] sm:$0xff] %v425
      %458 = vst [vmem:[%s236 + $0x70] sm:$0xff] %v426
      %459 = vst [vmem:[%s236 + $0x78] sm:$0xff] %v427
      %460 = vst [vmem:[%s236 + $0x80] sm:$0xff] %v428
      %461 = vst [vmem:[%s236 + $0x88] sm:$0xff] %v429
      %462 = vst [vmem:[%s236 + $0x90] sm:$0xff] %v430
      %463 = vst [vmem:[%s236 + $0x98] sm:$0xff] %v431
      %464 = vst [vmem:[%s236 + $0xa0] sm:$0xff] %v432
      %465 = vst [vmem:[%s236 + $0xa8] sm:$0xff] %v433
      %466 = vst [vmem:[%s236 + $0xb0] sm:$0xff] %v434
      %467 = vst [vmem:[%s236 + $0xb8] sm:$0xff] %v435
      %468 = vst [vmem:[%s236 + $0xc0] sm:$0xff] %v436
      %469 = vst [vmem:[%s236 + $0xc8] sm:$0xff] %v437
      %470 = vst [vmem:[%s236 + $0xd0] sm:$0xff] %v438
      %471 = vst [vmem:[%s236 + $0xd8] sm:$0xff] %v439
      %472 = vst [vmem:[%s236 + $0xe0] sm:$0xff] %v440
      %473 = vst [vmem:[%s236 + $0xe8] sm:$0xff] %v441
      %474 = vst [vmem:[%s236 + $0xf0] sm:$0xff] %v442
      %475 = vst [vmem:[%s236 + $0xf8] sm:$0xff] %v443
      %s476 = smul.u32 32, %s19
      %p477 = scmp.lt.s32.totalorder %s18, 1
      %s478 = scalar_select %p477, %s18, 1
      %p479 = scmp.lt.s32.totalorder %s476, 31
      %s480 = scalar_select %p479, %s476, 31
      %s481 = smul.addr %s478, 32
      %s482 = sadd.s32 %s480, %s481
      %s483 = smul.addr %s482, 8
      %s484 = scalar_lea.vmem %s3, %s483
      // Predicated region
      $region33: #{cnl_forward.3} parent=31 // pred_check
        %p485 = pneg %p126
      $region34: #{cnl_forward.3} parent=31 // pred_check_branch
        %487 = sbr.rel (%p485) target = $region36
      $region35: #{cnl_forward.3} parent=31 // pred_region
        %s488 = smul.u32 32, %s19
      $region36: #{cnl_forward.3} parent=31 // pred_fallthru
        _
    $region32: #{cnl_forward.3} parent=5 // pred_fallthru
      _
    %p489 = scmp.le.s32.totalorder 2, %s9
    // Predicated region
    $region37: #{cnl_forward.3} parent=5 // pred_check
      %p490 = pneg %p489
    $region38: #{cnl_forward.3} parent=5 // pred_check_branch
      %492 = sbr.rel (%p490) target = $region40
    $region39: #{cnl_forward.3} parent=5 // pred_region
      %s493 = ssub.s32 %s9, 2
      // Predicated region
      $region41: #{cnl_forward.3} parent=39 // pred_check
        %p494 = pneg %p132
      $region42: #{cnl_forward.3} parent=39 // pred_check_branch
        %496 = sbr.rel (%p494) target = $region44
      $region43: #{cnl_forward.3} parent=39 // pred_region
        %s497 = smul.u32 32, %s21
        %p498 = scmp.lt.s32.totalorder %s20, 1
        %s499 = scalar_select %p498, %s20, 1
        %p500 = scmp.lt.s32.totalorder %s497, 31
        %s501 = scalar_select %p500, %s497, 31
        %s502 = smul.addr %s499, 32
        %s503 = sadd.s32 %s501, %s502
        %s504 = smul.addr %s503, 8
        %s505 = scalar_lea.vmem %s3, %s504
      $region44: #{cnl_forward.3} parent=39 // pred_fallthru
        _
    $region40: #{cnl_forward.3} parent=5 // pred_fallthru
      _
  $region6: #{cnl_forward.3} parent=0 // loop_footer
    %s13 = sadd.s32 1, %s9
  $region7: #{cnl_forward.3} parent=0 // loop_footer_branch
    %8 = sbr.rel target = $region3
  $region8: #{cnl_forward.3} parent=0 // loop_exit
    _

// kernel: cnl_forward.2
$region0: #{cnl_forward.2}
  #allocation0 [shape = 'u32[]', space=smem, size = 0x4, offset = 0x4, fixed_abs, tag = 'smem constant byte address 0x4 - core index']
  #allocation1 [shape = 'u32[144,128]{1,0:T(1,128)}', space=vmem, size = 0x12000, scoped, tag = 'internal scratch']
  %s0 = inlined_call_operand.vmem [shape: bf16[2,256,36], index: 0, kind: input, shape index: {}]
  %s1 = inlined_call_operand.vmem [shape: bf16[36,128], index: 1, kind: input, shape index: {}]
  %s2 = inlined_call_operand.vmem [shape: f32[1,128], index: 2, kind: input, shape index: {}]
  %s3 = inlined_call_operand.vmem [shape: f32[2,256,128], index: 3, kind: output, shape index: {0}]
  %s4 = inlined_call_operand.vmem [shape: f32[2,2,128], index: 4, kind: output, shape index: {1}]
  %5 = xla_tuple %s3, %s4
  %s6 = sld [smem:[#allocation0]]
  $region57: #{cnl_forward.2} parent=0
    _
  %s8 = ssub.s32 1, %s6
  %s9 = scalar_select 0, %s8, %s6
  loop: start=0, step=1, limit=4
  $region2: #{cnl_forward.2} parent=0 // loop_pre_header
    _
  $region3: #{cnl_forward.2} parent=0 // loop_header
    %s11 = sphi 0, %s15
    %p12 = scmp.ge.s32.totalorder %s11, 4
    %s18 = sphi 0, %s30
    %s19 = sphi 0, %s26
    %s20 = sphi 0, %s18
    %s21 = sphi 0, %s19
    %s22 = sphi 0, %s20
    %s23 = sphi 0, %s21
    %s35 = sphi 0, %s37
    %s38 = sphi 0, %s35
    %s39 = sphi 0, %s38
    %s55 = sphi 0, %s39
    %s59 = sphi 0, %s59
    %s61 = sphi 0, %s59
    %s62 = sphi 0, %s61
    %s76 = sphi 0, %s62
    %s80 = sphi 0, %s80
    %s82 = sphi 0, %s80
    %s83 = sphi 0, %s82
    %s97 = sphi 0, %s83
    %s105 = sphi 0, %s107
    %s108 = sphi 0, %s105
    %s109 = sphi 0, %s108
    %s125 = sphi 0, %s109
    %s131 = sphi 0, %s133
    %s134 = sphi 0, %s131
    %s135 = sphi 0, %s134
    %s151 = sphi 0, %s135
  $region4: #{cnl_forward.2} parent=0 // loop_header_branch
    %14 = sbr.rel (%p12) target = $region8
  $region5: #{cnl_forward.2} parent=0 // loop_body
    %s16 = ssub.s32 %s11, 1
    %s17 = ssub.s32 %s11, 2
    %s24 = sadd.s32 1, %s19
    %p25 = scmp.ge.s32.totalorder %s24, 1
    %s26 = scalar_select %p25, 0, %s24
    %s27 = sadd.s32 1, %s18
    %s28 = scalar_select %p25, %s27, %s18
    %p29 = scmp.ge.s32.totalorder %s28, 2
    %s30 = scalar_select %p29, 0, %s28
    %s31 = ssub.s32 %s18, %s30
    %s32 = ssub.s32 %s19, %s26
    %s33 = sor.u32 %s31, %s32
    %p34 = scmp.eq.s32.totalorder %s33, 0
    %s36 = sadd.s32 %s35, 1
    %s37 = scalar_select %p34, %s35, %s36
    %p40 = pneg %p34
    %p41 = scmp.eq.s32.totalorder %s11, 1
    %p42 = por %p40, %p41
    %p43 = scmp.ne.s32.totalorder %s35, %s38
    %p44 = scmp.eq.s32.totalorder %s11, 0
    %p45 = por %p43, %p44
    %p46 = scmp.ne.s32.totalorder %s35, %s38
    %p47 = scmp.eq.s32.totalorder %s16, 1
    %p48 = por %p46, %p47
    %p49 = scmp.ne.s32.totalorder %s38, %s39
    %p50 = scmp.eq.s32.totalorder %s16, 0
    %p51 = por %p49, %p50
    %p52 = scmp.ne.s32.totalorder %s38, %s39
    %p53 = scmp.eq.s32.totalorder %s17, 1
    %p54 = por %p52, %p53
    %p56 = scmp.ne.s32.totalorder %s39, %s55
    %p57 = scmp.eq.s32.totalorder %s17, 0
    %p58 = por %p56, %p57
    %s60 = sadd.s32 %s59, 1
    %p63 = scmp.eq.s32.totalorder %s11, 1
    %p64 = scmp.ne.s32.totalorder %s59, %s61
    %p65 = scmp.eq.s32.totalorder %s11, 0
    %p66 = por %p64, %p65
    %p67 = scmp.ne.s32.totalorder %s59, %s61
    %p68 = scmp.eq.s32.totalorder %s16, 1
    %p69 = por %p67, %p68
    %p70 = scmp.ne.s32.totalorder %s61, %s62
    %p71 = scmp.eq.s32.totalorder %s16, 0
    %p72 = por %p70, %p71
    %p73 = scmp.ne.s32.totalorder %s61, %s62
    %p74 = scmp.eq.s32.totalorder %s17, 1
    %p75 = por %p73, %p74
    %p77 = scmp.ne.s32.totalorder %s62, %s76
    %p78 = scmp.eq.s32.totalorder %s17, 0
    %p79 = por %p77, %p78
    %s81 = sadd.s32 %s80, 1
    %p84 = scmp.eq.s32.totalorder %s11, 1
    %p85 = scmp.ne.s32.totalorder %s80, %s82
    %p86 = scmp.eq.s32.totalorder %s11, 0
    %p87 = por %p85, %p86
    %p88 = scmp.ne.s32.totalorder %s80, %s82
    %p89 = scmp.eq.s32.totalorder %s16, 1
    %p90 = por %p88, %p89
    %p91 = scmp.ne.s32.totalorder %s82, %s83
    %p92 = scmp.eq.s32.totalorder %s16, 0
    %p93 = por %p91, %p92
    %p94 = scmp.ne.s32.totalorder %s82, %s83
    %p95 = scmp.eq.s32.totalorder %s17, 1
    %p96 = por %p94, %p95
    %p98 = scmp.ne.s32.totalorder %s83, %s97
    %p99 = scmp.eq.s32.totalorder %s17, 0
    %p100 = por %p98, %p99
    %s101 = ssub.s32 %s18, %s30
    %s102 = ssub.s32 %s19, %s26
    %s103 = sor.u32 %s101, %s102
    %p104 = scmp.eq.s32.totalorder %s103, 0
    %s106 = sadd.s32 %s105, 1
    %s107 = scalar_select %p104, %s105, %s106
    %p110 = pneg %p104
    %p111 = scmp.eq.s32.totalorder %s11, 1
    %p112 = por %p110, %p111
    %p113 = scmp.ne.s32.totalorder %s105, %s108
    %p114 = scmp.eq.s32.totalorder %s11, 0
    %p115 = por %p113, %p114
    %p116 = scmp.ne.s32.totalorder %s105, %s108
    %p117 = scmp.eq.s32.totalorder %s16, 1
    %p118 = por %p116, %p117
    %p119 = scmp.ne.s32.totalorder %s108, %s109
    %p120 = scmp.eq.s32.totalorder %s16, 0
    %p121 = por %p119, %p120
    %p122 = scmp.ne.s32.totalorder %s108, %s109
    %p123 = scmp.eq.s32.totalorder %s17, 1
    %p124 = por %p122, %p123
    %p126 = scmp.ne.s32.totalorder %s109, %s125
    %p127 = scmp.eq.s32.totalorder %s17, 0
    %p128 = por %p126, %p127
    %s129 = ssub.s32 %s18, %s30
    %p130 = scmp.eq.s32.totalorder %s129, 0
    %s132 = sadd.s32 %s131, 1
    %s133 = scalar_select %p130, %s131, %s132
    %p136 = pneg %p130
    %p137 = scmp.eq.s32.totalorder %s11, 1
    %p138 = por %p136, %p137
    %p139 = scmp.ne.s32.totalorder %s131, %s134
    %p140 = scmp.eq.s32.totalorder %s11, 0
    %p141 = por %p139, %p140
    %p142 = scmp.ne.s32.totalorder %s131, %s134
    %p143 = scmp.eq.s32.totalorder %s16, 1
    %p144 = por %p142, %p143
    %p145 = scmp.ne.s32.totalorder %s134, %s135
    %p146 = scmp.eq.s32.totalorder %s16, 0
    %p147 = por %p145, %p146
    %p148 = scmp.ne.s32.totalorder %s134, %s135
    %p149 = scmp.eq.s32.totalorder %s17, 1
    %p150 = por %p148, %p149
    %p152 = scmp.ne.s32.totalorder %s135, %s151
    %p153 = scmp.eq.s32.totalorder %s17, 0
    %p154 = por %p152, %p153
    %p155 = scmp.le.s32.totalorder 1, %s11
    %p156 = scmp.lt.s32.totalorder %s11, 3
    %p157 = pnand %p155, %p156
    %p158 = pneg %p157
    // Predicated region
    $region9: #{cnl_forward.2} parent=5 // pred_check
      _
    $region10: #{cnl_forward.2} parent=5 // pred_check_branch
      %160 = sbr.rel (%p157) target = $region12
    $region11: #{cnl_forward.2} parent=5 // pred_region
      %s161 = ssub.s32 %s11, 1
      // Predicated region
      $region13: #{cnl_forward.2} parent=11 // pred_check
        %p162 = pneg %p72
      $region14: #{cnl_forward.2} parent=11 // pred_check_branch
        %164 = sbr.rel (%p162) target = $region16
      $region15: #{cnl_forward.2} parent=11 // pred_region
        _
      $region16: #{cnl_forward.2} parent=11 // pred_fallthru
        _
      // Predicated region
      $region17: #{cnl_forward.2} parent=11 // pred_check
        %p165 = pneg %p93
      $region18: #{cnl_forward.2} parent=11 // pred_check_branch
        %167 = sbr.rel (%p165) target = $region20
      $region19: #{cnl_forward.2} parent=11 // pred_region
        _
      $region20: #{cnl_forward.2} parent=11 // pred_fallthru
        _
    $region12: #{cnl_forward.2} parent=5 // pred_fallthru
      _
    %p168 = scmp.lt.s32.totalorder %s11, 2
    // Predicated region
    $region21: #{cnl_forward.2} parent=5 // pred_check
      %p169 = pneg %p168
    $region22: #{cnl_forward.2} parent=5 // pred_check_branch
      %171 = sbr.rel (%p169) target = $region24
    $region23: #{cnl_forward.2} parent=5 // pred_region
      // Predicated region
      $region25: #{cnl_forward.2} parent=23 // pred_check
        %p172 = pneg %p45
      $region26: #{cnl_forward.2} parent=23 // pred_check_branch
        %174 = sbr.rel (%p172) target = $region28
      $region27: #{cnl_forward.2} parent=23 // pred_region
        %s175 = smul.u32 32, %s19
        %p176 = scmp.lt.s32.totalorder %s18, 1
        %s177 = scalar_select %p176, %s18, 1
        %p178 = scmp.lt.s32.totalorder %s175, 31
        %s179 = scalar_select %p178, %s175, 31
        %s180 = smul.addr %s177, 32
        %s181 = sadd.s32 %s179, %s180
        %s182 = smul.addr %s181, 4
        %s183 = scalar_lea.vmem %s0, %s182
        %s184 = smul.u32 32, %s19
      $region28: #{cnl_forward.2} parent=23 // pred_fallthru
        _
    $region24: #{cnl_forward.2} parent=5 // pred_fallthru
      _
    %p185 = scmp.le.s32.totalorder 1, %s11
    %p186 = scmp.lt.s32.totalorder %s11, 3
    %p187 = pnand %p185, %p186
    %p188 = pneg %p187
    // Predicated region
    $region29: #{cnl_forward.2} parent=5 // pred_check
      _
    $region30: #{cnl_forward.2} parent=5 // pred_check_branch
      %190 = sbr.rel (%p187) target = $region32
    $region31: #{cnl_forward.2} parent=5 // pred_region
      %s191 = ssub.s32 %s11, 1
      %s192 = smul.u32 32, %s21
      %p193 = scmp.lt.s32.totalorder %s20, 1
      %s194 = scalar_select %p193, %s20, 1
      %p195 = scmp.lt.s32.totalorder %s192, 31
      %s196 = scalar_select %p195, %s192, 31
      %s197 = smul.addr %s194, 32
      %s198 = sadd.s32 %s196, %s197
      %s199 = smul.addr %s198, 4
      %s200 = scalar_lea.vmem %s0, %s199
      %p201 = pneg %p51
      %p202 = pneg %p48
      %p203 = pneg %p72
      %p204 = pneg %p69
      %p205 = pneg %p93
      %p206 = pneg %p90
      %p207 = pneg %p121
      %p208 = pneg %p118
      %s209 = smul.u32 32, %s21
      %p210 = scmp.lt.s32.totalorder %s20, 1
      %s211 = scalar_select %p210, %s20, 1
      %p212 = scmp.lt.s32.totalorder %s209, 31
      %s213 = scalar_select %p212, %s209, 31
      %s214 = smul.addr %s211, 32
      %s215 = sadd.s32 %s213, %s214
      %s216 = smul.addr %s215, 8
      %s217 = scalar_lea.vmem %s3, %s216
      %p218 = pneg %p147
      %p219 = pneg %p144
      %p220 = scmp.lt.s32.totalorder %s20, 1
      %s221 = scalar_select %p220, %s20, 1
      %s222 = smul.addr %s221, 2
      %s223 = scalar_lea.vmem %s4, %s222
      %s224 = smul.u32 32, %s21
      %p225 = scmp.lt.s32.totalorder %s20, 1
      %s226 = scalar_select %p225, %s20, 1
      %p227 = scmp.lt.s32.totalorder %s224, 31
      %s228 = scalar_select %p227, %s224, 31
      %s229 = smul.addr %s226, 32
      %s230 = sadd.s32 %s228, %s229
      %s231 = smul.addr %s230, 4
      %s232 = scalar_lea.vmem %s0, %s231
      %s233 = smul.u32 32, %s21
      %s234 = smul.u32 32, %s21
      %p235 = scmp.lt.s32.totalorder %s20, 1
      %s236 = scalar_select %p235, %s20, 1
      %p237 = scmp.lt.s32.totalorder %s234, 31
      %s238 = scalar_select %p237, %s234, 31
      %s239 = smul.addr %s236, 32
      %s240 = sadd.s32 %s238, %s239
      %s241 = smul.addr %s240, 8
      %s242 = scalar_lea.vmem %s3, %s241
      %s243 = smul.u32 32, %s21
      %p244 = scmp.lt.s32.totalorder %s20, 1
      %s245 = scalar_select %p244, %s20, 1
      %s246 = smul.addr %s245, 2
      %s247 = scalar_lea.vmem %s4, %s246
      %v249 = vld [vmem:[%s232] sm:$0xf]
      %v250 = vld [vmem:[%s232 + $0x4] sm:$0xf]
      %v251 = vld [vmem:[%s232 + $0x8] sm:$0xf]
      %v252 = vld [vmem:[%s232 + $0xc] sm:$0xf]
      %v253 = vld [vmem:[%s232 + $0x10] sm:$0xf]
      %v254 = vld [vmem:[%s232 + $0x14] sm:$0xf]
      %v255 = vld [vmem:[%s232 + $0x18] sm:$0xf]
      %v256 = vld [vmem:[%s232 + $0x1c] sm:$0xf]
      %v257 = vld [vmem:[%s232 + $0x20] sm:$0xf]
      %v258 = vld [vmem:[%s232 + $0x24] sm:$0xf]
      %v259 = vld [vmem:[%s232 + $0x28] sm:$0xf]
      %v260 = vld [vmem:[%s232 + $0x2c] sm:$0xf]
      %v261 = vld [vmem:[%s232 + $0x30] sm:$0xf]
      %v262 = vld [vmem:[%s232 + $0x34] sm:$0xf]
      %v263 = vld [vmem:[%s232 + $0x38] sm:$0xf]
      %v264 = vld [vmem:[%s232 + $0x3c] sm:$0xf]
      %v265 = vld [vmem:[%s232 + $0x40] sm:$0xf]
      %v266 = vld [vmem:[%s232 + $0x44] sm:$0xf]
      %v267 = vld [vmem:[%s232 + $0x48] sm:$0xf]
      %v268 = vld [vmem:[%s232 + $0x4c] sm:$0xf]
      %v269 = vld [vmem:[%s232 + $0x50] sm:$0xf]
      %v270 = vld [vmem:[%s232 + $0x54] sm:$0xf]
      %v271 = vld [vmem:[%s232 + $0x58] sm:$0xf]
      %v272 = vld [vmem:[%s232 + $0x5c] sm:$0xf]
      %v273 = vld [vmem:[%s232 + $0x60] sm:$0xf]
      %v274 = vld [vmem:[%s232 + $0x64] sm:$0xf]
      %v275 = vld [vmem:[%s232 + $0x68] sm:$0xf]
      %v276 = vld [vmem:[%s232 + $0x6c] sm:$0xf]
      %v277 = vld [vmem:[%s232 + $0x70] sm:$0xf]
      %v278 = vld [vmem:[%s232 + $0x74] sm:$0xf]
      %v279 = vld [vmem:[%s232 + $0x78] sm:$0xf]
      %v280 = vld [vmem:[%s232 + $0x7c] sm:$0xf]
      %v281 = vld [vmem:[%s1] sm:$0xf]
      %v282 = vld [vmem:[%s1 + $0x4] sm:$0xf]
      %v283 = vld [vmem:[%s1 + $0x8] sm:$0xf]
      %v284 = vld [vmem:[%s1 + $0xc] sm:$0xf]
      %v285 = vld [vmem:[%s1 + $0x10] sm:$0x3]
      %v286 = vld [vmem:[%s2] sm:$0x1]
      %v288 = vlaneseq
      %v289 = vshrl.u32 %v288, 7
      %v290 = vsub.s32 0, %v289
      %v291 = vrot.slane %v286, %v290
      %v325 = vunpack.c.l.b16 %v249
      %v326 = vunpack.c.l.b16 %v250
      %v327 = vunpack.c.l.b16 %v251
      %v328 = vunpack.c.l.b16 %v252
      %v329 = vunpack.c.l.b16 %v253
      %v330 = vunpack.c.l.b16 %v254
      %v331 = vunpack.c.l.b16 %v255
      %v332 = vunpack.c.l.b16 %v256
      %v333 = vunpack.c.l.b16 %v257
      %v334 = vunpack.c.l.b16 %v258
      %v335 = vunpack.c.l.b16 %v259
      %v336 = vunpack.c.l.b16 %v260
      %v337 = vunpack.c.l.b16 %v261
      %v338 = vunpack.c.l.b16 %v262
      %v339 = vunpack.c.l.b16 %v263
      %v340 = vunpack.c.l.b16 %v264
      %v341 = vunpack.c.l.b16 %v265
      %v342 = vunpack.c.l.b16 %v266
      %v343 = vunpack.c.l.b16 %v267
      %v344 = vunpack.c.l.b16 %v268
      %v345 = vunpack.c.l.b16 %v269
      %v346 = vunpack.c.l.b16 %v270
      %v347 = vunpack.c.l.b16 %v271
      %v348 = vunpack.c.l.b16 %v272
      %v349 = vunpack.c.l.b16 %v273
      %v350 = vunpack.c.l.b16 %v274
      %v351 = vunpack.c.l.b16 %v275
      %v352 = vunpack.c.l.b16 %v276
      %v353 = vunpack.c.l.b16 %v277
      %v354 = vunpack.c.l.b16 %v278
      %v355 = vunpack.c.l.b16 %v279
      %v356 = vunpack.c.l.b16 %v280
      %v357 = vpack.c.b16 %v326, %v325
      %v358 = vpack.c.b16 %v328, %v327
      %v359 = vpack.c.b16 %v330, %v329
      %v360 = vpack.c.b16 %v332, %v331
      %v361 = vpack.c.b16 %v334, %v333
      %v362 = vpack.c.b16 %v336, %v335
      %v363 = vpack.c.b16 %v338, %v337
      %v364 = vpack.c.b16 %v340, %v339
      %v365 = vpack.c.b16 %v342, %v341
      %v366 = vpack.c.b16 %v344, %v343
      %v367 = vpack.c.b16 %v346, %v345
      %v368 = vpack.c.b16 %v348, %v347
      %v369 = vpack.c.b16 %v350, %v349
      %v370 = vpack.c.b16 %v352, %v351
      %v371 = vpack.c.b16 %v354, %v353
      %v372 = vpack.c.b16 %v356, %v355
      %v378 = vunpack.c.l.b16 %v281
      %v379 = vunpack.c.l.b16 %v282
      %v380 = vunpack.c.l.b16 %v283
      %v381 = vunpack.c.l.b16 %v284
      %v382 = vunpack.c.l.b16 %v285
      %v383 = vpack.c.b16 %v379, %v378
      %v384 = vpack.c.b16 %v381, %v380
      %v385 = vpack.c.b16 %v382, %v382
      %vm388 = vcmask 293888
      %v390 = vsel %vm388, %v357, 0
      %v393 = vsel %vm388, %v358, 0
      %v396 = vsel %vm388, %v359, 0
      %v399 = vsel %vm388, %v360, 0
      %v402 = vsel %vm388, %v361, 0
      %v405 = vsel %vm388, %v362, 0
      %v408 = vsel %vm388, %v363, 0
      %v411 = vsel %vm388, %v364, 0
      %v414 = vsel %vm388, %v365, 0
      %v417 = vsel %vm388, %v366, 0
      %v420 = vsel %vm388, %v367, 0
      %v423 = vsel %vm388, %v368, 0
      %v426 = vsel %vm388, %v369, 0
      %v429 = vsel %vm388, %v370, 0
      %v432 = vsel %vm388, %v371, 0
      %v435 = vsel %vm388, %v372, 0
      %vm437 = vcmask 1041408
      %v439 = vsel %vm437, %v385, 0
      %441 = vmatprep.subr.bf16.mxu0 0
      %442 = vmatpush1.bf16.msra.mxu0 0
      %443 = vmatprep.subr.bf16.mxu0 0
      %444 = vmatpush1.bf16.msra.mxu0 0
      %445 = vmatprep.subr.bf16.mxu0 0
      %446 = vmatpush1.bf16.msra.mxu0 0
      %447 = vmatprep.subr.bf16.mxu0 0
      %448 = vmatpush1.bf16.msra.mxu0 0
      %449 = vmatprep.subr.bf16.mxu0 0
      %450 = vmatpush1.bf16.msra.mxu0 0
      %451 = vmatprep.subr.bf16.mxu0 0
      %452 = vmatpush1.bf16.msra.mxu0 %v439
      %453 = vmatprep.subr.bf16.mxu0 0
      %454 = vmatpush1.bf16.msra.mxu0 %v384
      %455 = vmatprep.subr.bf16.mxu0 0
      %456 = vmatpush1.bf16.msra.mxu0 %v383
      %457 = vmatprep.subr.bf16.mxu0 0
      %458 = vmatpush2.bf16.msra.mxu0 0
      %459 = vmatprep.subr.bf16.mxu0 0
      %460 = vmatpush2.bf16.msra.mxu0 0
      %461 = vmatprep.subr.bf16.mxu0 0
      %462 = vmatpush2.bf16.msra.mxu0 0
      %463 = vmatprep.subr.bf16.mxu0 0
      %464 = vmatpush2.bf16.msra.mxu0 0
      %465 = vmatprep.subr.bf16.mxu0 0
      %466 = vmatpush2.bf16.msra.mxu0 0
      %467 = vmatprep.subr.bf16.mxu0 0
      %468 = vmatpush2.bf16.msra.mxu0 0
      %469 = vmatprep.subr.bf16.mxu0 0
      %470 = vmatpush2.bf16.msra.mxu0 0
      %471 = vmatprep.subr.bf16.mxu0 0
      %472 = vmatpush2.bf16.msra.mxu0 0
      %473 = vmatprep.mubr.bf16.mxu0 0
      %474 = vmatmul.mubr.bf16.gmra.mxu0 %v390
      %v475 = vpop.f32.mrf.mxu0
      %v476 = vadd.f32 %v291, %v475
      %v477 = vpop.f32.mrf.mxu0
      %v478 = vpop.f32.mrf.mxu0
      %v479 = vadd.f32 %v291, %v478
      %v480 = vpop.f32.mrf.mxu0
      %481 = vmatprep.mubr.bf16.mxu0 0
      %482 = vmatmul.mubr.bf16.gmra.mxu0 %v393
      %v483 = vpop.f32.mrf.mxu0
      %v484 = vadd.f32 %v291, %v483
      %v485 = vpop.f32.mrf.mxu0
      %v486 = vpop.f32.mrf.mxu0
      %v487 = vadd.f32 %v291, %v486
      %v488 = vpop.f32.mrf.mxu0
      %489 = vmatprep.mubr.bf16.mxu0 0
      %490 = vmatmul.mubr.bf16.gmra.mxu0 %v396
      %v491 = vpop.f32.mrf.mxu0
      %v492 = vadd.f32 %v291, %v491
      %v493 = vpop.f32.mrf.mxu0
      %v494 = vpop.f32.mrf.mxu0
      %v495 = vadd.f32 %v291, %v494
      %v496 = vpop.f32.mrf.mxu0
      %497 = vmatprep.mubr.bf16.mxu0 0
      %498 = vmatmul.mubr.bf16.gmra.mxu0 %v399
      %v499 = vpop.f32.mrf.mxu0
      %v500 = vadd.f32 %v291, %v499
      %v501 = vpop.f32.mrf.mxu0
      %v502 = vpop.f32.mrf.mxu0
      %v503 = vadd.f32 %v291, %v502
      %v504 = vpop.f32.mrf.mxu0
      %505 = vmatprep.mubr.bf16.mxu0 0
      %506 = vmatmul.mubr.bf16.gmra.mxu0 %v402
      %v507 = vpop.f32.mrf.mxu0
      %v508 = vadd.f32 %v291, %v507
      %v509 = vpop.f32.mrf.mxu0
      %v510 = vpop.f32.mrf.mxu0
      %v511 = vadd.f32 %v291, %v510
      %v512 = vpop.f32.mrf.mxu0
      %513 = vmatprep.mubr.bf16.mxu0 0
      %514 = vmatmul.mubr.bf16.gmra.mxu0 %v405
      %v515 = vpop.f32.mrf.mxu0
      %v516 = vadd.f32 %v291, %v515
      %v517 = vpop.f32.mrf.mxu0
      %v518 = vpop.f32.mrf.mxu0
      %v519 = vadd.f32 %v291, %v518
      %v520 = vpop.f32.mrf.mxu0
      %521 = vmatprep.mubr.bf16.mxu0 0
      %522 = vmatmul.mubr.bf16.gmra.mxu0 %v408
      %v523 = vpop.f32.mrf.mxu0
      %v524 = vadd.f32 %v291, %v523
      %v525 = vpop.f32.mrf.mxu0
      %v526 = vpop.f32.mrf.mxu0
      %v527 = vadd.f32 %v291, %v526
      %v528 = vpop.f32.mrf.mxu0
      %529 = vmatprep.mubr.bf16.mxu0 0
      %530 = vmatmul.mubr.bf16.gmra.mxu0 %v411
      %v531 = vpop.f32.mrf.mxu0
      %v532 = vadd.f32 %v291, %v531
      %v533 = vpop.f32.mrf.mxu0
      %v534 = vpop.f32.mrf.mxu0
      %v535 = vadd.f32 %v291, %v534
      %v536 = vpop.f32.mrf.mxu0
      %537 = vmatprep.mubr.bf16.mxu0 0
      %538 = vmatmul.mubr.bf16.gmra.mxu0 %v414
      %v539 = vpop.f32.mrf.mxu0
      %v540 = vadd.f32 %v291, %v539
      %v541 = vpop.f32.mrf.mxu0
      %v542 = vpop.f32.mrf.mxu0
      %v543 = vadd.f32 %v291, %v542
      %v544 = vpop.f32.mrf.mxu0
      %545 = vmatprep.mubr.bf16.mxu0 0
      %546 = vmatmul.mubr.bf16.gmra.mxu0 %v417
      %v547 = vpop.f32.mrf.mxu0
      %v548 = vadd.f32 %v291, %v547
      %v549 = vpop.f32.mrf.mxu0
      %v550 = vpop.f32.mrf.mxu0
      %v551 = vadd.f32 %v291, %v550
      %v552 = vpop.f32.mrf.mxu0
      %553 = vmatprep.mubr.bf16.mxu0 0
      %554 = vmatmul.mubr.bf16.gmra.mxu0 %v420
      %v555 = vpop.f32.mrf.mxu0
      %v556 = vadd.f32 %v291, %v555
      %v557 = vpop.f32.mrf.mxu0
      %v558 = vpop.f32.mrf.mxu0
      %v559 = vadd.f32 %v291, %v558
      %v560 = vpop.f32.mrf.mxu0
      %561 = vmatprep.mubr.bf16.mxu0 0
      %562 = vmatmul.mubr.bf16.gmra.mxu0 %v423
      %v563 = vpop.f32.mrf.mxu0
      %v564 = vadd.f32 %v291, %v563
      %v565 = vpop.f32.mrf.mxu0
      %v566 = vpop.f32.mrf.mxu0
      %v567 = vadd.f32 %v291, %v566
      %v568 = vpop.f32.mrf.mxu0
      %569 = vmatprep.mubr.bf16.mxu0 0
      %570 = vmatmul.mubr.bf16.gmra.mxu0 %v426
      %v571 = vpop.f32.mrf.mxu0
      %v572 = vadd.f32 %v291, %v571
      %v573 = vpop.f32.mrf.mxu0
      %v574 = vpop.f32.mrf.mxu0
      %v575 = vadd.f32 %v291, %v574
      %v576 = vpop.f32.mrf.mxu0
      %577 = vmatprep.mubr.bf16.mxu0 0
      %578 = vmatmul.mubr.bf16.gmra.mxu0 %v429
      %v579 = vpop.f32.mrf.mxu0
      %v580 = vadd.f32 %v291, %v579
      %v581 = vpop.f32.mrf.mxu0
      %v582 = vpop.f32.mrf.mxu0
      %v583 = vadd.f32 %v291, %v582
      %v584 = vpop.f32.mrf.mxu0
      %585 = vmatprep.mubr.bf16.mxu0 0
      %586 = vmatmul.mubr.bf16.gmra.mxu0 %v432
      %v587 = vpop.f32.mrf.mxu0
      %v588 = vadd.f32 %v291, %v587
      %v589 = vpop.f32.mrf.mxu0
      %v590 = vpop.f32.mrf.mxu0
      %v591 = vadd.f32 %v291, %v590
      %v592 = vpop.f32.mrf.mxu0
      %593 = vmatprep.mubr.bf16.mxu0 0
      %594 = vmatmul.mubr.bf16.gmra.mxu0 %v435
      %v595 = vpop.f32.mrf.mxu0
      %v596 = vadd.f32 %v291, %v595
      %v597 = vpop.f32.mrf.mxu0
      %v598 = vpop.f32.mrf.mxu0
      %v599 = vadd.f32 %v291, %v598
      %v600 = vpop.f32.mrf.mxu0
      %601 = vdwg.mxu0
      %602 = vst [vmem:[%s242] sm:$0xff] %v476
      %603 = vst [vmem:[%s242 + $0x8] sm:$0xff] %v479
      %604 = vst [vmem:[%s242 + $0x10] sm:$0xff] %v484
      %605 = vst [vmem:[%s242 + $0x18] sm:$0xff] %v487
      %606 = vst [vmem:[%s242 + $0x20] sm:$0xff] %v492
      %607 = vst [vmem:[%s242 + $0x28] sm:$0xff] %v495
      %608 = vst [vmem:[%s242 + $0x30] sm:$0xff] %v500
      %609 = vst [vmem:[%s242 + $0x38] sm:$0xff] %v503
      %610 = vst [vmem:[%s242 + $0x40] sm:$0xff] %v508
      %611 = vst [vmem:[%s242 + $0x48] sm:$0xff] %v511
      %612 = vst [vmem:[%s242 + $0x50] sm:$0xff] %v516
      %613 = vst [vmem:[%s242 + $0x58] sm:$0xff] %v519
      %614 = vst [vmem:[%s242 + $0x60] sm:$0xff] %v524
      %615 = vst [vmem:[%s242 + $0x68] sm:$0xff] %v527
      %616 = vst [vmem:[%s242 + $0x70] sm:$0xff] %v532
      %617 = vst [vmem:[%s242 + $0x78] sm:$0xff] %v535
      %618 = vst [vmem:[%s242 + $0x80] sm:$0xff] %v540
      %619 = vst [vmem:[%s242 + $0x88] sm:$0xff] %v543
      %620 = vst [vmem:[%s242 + $0x90] sm:$0xff] %v548
      %621 = vst [vmem:[%s242 + $0x98] sm:$0xff] %v551
      %622 = vst [vmem:[%s242 + $0xa0] sm:$0xff] %v556
      %623 = vst [vmem:[%s242 + $0xa8] sm:$0xff] %v559
      %624 = vst [vmem:[%s242 + $0xb0] sm:$0xff] %v564
      %625 = vst [vmem:[%s242 + $0xb8] sm:$0xff] %v567
      %626 = vst [vmem:[%s242 + $0xc0] sm:$0xff] %v572
      %627 = vst [vmem:[%s242 + $0xc8] sm:$0xff] %v575
      %628 = vst [vmem:[%s242 + $0xd0] sm:$0xff] %v580
      %629 = vst [vmem:[%s242 + $0xd8] sm:$0xff] %v583
      %630 = vst [vmem:[%s242 + $0xe0] sm:$0xff] %v588
      %631 = vst [vmem:[%s242 + $0xe8] sm:$0xff] %v591
      %632 = vst [vmem:[%s242 + $0xf0] sm:$0xff] %v596
      %633 = vst [vmem:[%s242 + $0xf8] sm:$0xff] %v599
      %v634 = vlaneseq
      %v635 = vshrl.u32 %v634, 7
      %v636 = vadd.s32 %v635, 8
      %v637 = vadd.s32 %v635, 16
      %v638 = vadd.s32 %v635, 24
      %v639 = vadd.s32 %v635, 32
      %v640 = vadd.s32 %v635, 40
      %v641 = vadd.s32 %v635, 48
      %v642 = vadd.s32 %v635, 56
      %v643 = vadd.s32 %v635, 64
      %v644 = vadd.s32 %v635, 72
      %v645 = vadd.s32 %v635, 80
      %v646 = vadd.s32 %v635, 88
      %v647 = vadd.s32 %v635, 96
      %v648 = vadd.s32 %v635, 104
      %v649 = vadd.s32 %v635, 112
      %v650 = vadd.s32 %v635, 120
      %v651 = vadd.s32 %v635, 128
      %v652 = vadd.s32 %v635, 136
      %v653 = vadd.s32 %v635, 144
      %v654 = vadd.s32 %v635, 152
      %v655 = vadd.s32 %v635, 160
      %v656 = vadd.s32 %v635, 168
      %v657 = vadd.s32 %v635, 176
      %v658 = vadd.s32 %v635, 184
      %v659 = vadd.s32 %v635, 192
      %v660 = vadd.s32 %v635, 200
      %v661 = vadd.s32 %v635, 208
      %v662 = vadd.s32 %v635, 216
      %v663 = vadd.s32 %v635, 224
      %v664 = vadd.s32 %v635, 232
      %v665 = vadd.s32 %v635, 240
      %v666 = vadd.s32 %v635, 248
      %s667 = smul.u32 %s21, 256
      %v668 = vstv %s667
      %v669 = vadd.s32 %v635, %v668
      %v670 = vadd.s32 %v636, %v668
      %v671 = vadd.s32 %v637, %v668
      %v672 = vadd.s32 %v638, %v668
      %v673 = vadd.s32 %v639, %v668
      %v674 = vadd.s32 %v640, %v668
      %v675 = vadd.s32 %v641, %v668
      %v676 = vadd.s32 %v642, %v668
      %v677 = vadd.s32 %v643, %v668
      %v678 = vadd.s32 %v644, %v668
      %v679 = vadd.s32 %v645, %v668
      %v680 = vadd.s32 %v646, %v668
      %v681 = vadd.s32 %v647, %v668
      %v682 = vadd.s32 %v648, %v668
      %v683 = vadd.s32 %v649, %v668
      %v684 = vadd.s32 %v650, %v668
      %v685 = vadd.s32 %v651, %v668
      %v686 = vadd.s32 %v652, %v668
      %v687 = vadd.s32 %v653, %v668
      %v688 = vadd.s32 %v654, %v668
      %v689 = vadd.s32 %v655, %v668
      %v690 = vadd.s32 %v656, %v668
      %v691 = vadd.s32 %v657, %v668
      %v692 = vadd.s32 %v658, %v668
      %v693 = vadd.s32 %v659, %v668
      %v694 = vadd.s32 %v660, %v668
      %v695 = vadd.s32 %v661, %v668
      %v696 = vadd.s32 %v662, %v668
      %v697 = vadd.s32 %v663, %v668
      %v698 = vadd.s32 %v664, %v668
      %v699 = vadd.s32 %v665, %v668
      %v700 = vadd.s32 %v666, %v668
      %vm701 = vcmp.lt.s32.totalorder %v669, 256
      %vm702 = vcmp.lt.s32.totalorder %v670, 256
      %vm703 = vcmp.lt.s32.totalorder %v671, 256
      %vm704 = vcmp.lt.s32.totalorder %v672, 256
      %vm705 = vcmp.lt.s32.totalorder %v673, 256
      %vm706 = vcmp.lt.s32.totalorder %v674, 256
      %vm707 = vcmp.lt.s32.totalorder %v675, 256
      %vm708 = vcmp.lt.s32.totalorder %v676, 256
      %vm709 = vcmp.lt.s32.totalorder %v677, 256
      %vm710 = vcmp.lt.s32.totalorder %v678, 256
      %vm711 = vcmp.lt.s32.totalorder %v679, 256
      %vm712 = vcmp.lt.s32.totalorder %v680, 256
      %vm713 = vcmp.lt.s32.totalorder %v681, 256
      %vm714 = vcmp.lt.s32.totalorder %v682, 256
      %vm715 = vcmp.lt.s32.totalorder %v683, 256
      %vm716 = vcmp.lt.s32.totalorder %v684, 256
      %vm717 = vcmp.lt.s32.totalorder %v685, 256
      %vm718 = vcmp.lt.s32.totalorder %v686, 256
      %vm719 = vcmp.lt.s32.totalorder %v687, 256
      %vm720 = vcmp.lt.s32.totalorder %v688, 256
      %vm721 = vcmp.lt.s32.totalorder %v689, 256
      %vm722 = vcmp.lt.s32.totalorder %v690, 256
      %vm723 = vcmp.lt.s32.totalorder %v691, 256
      %vm724 = vcmp.lt.s32.totalorder %v692, 256
      %vm725 = vcmp.lt.s32.totalorder %v693, 256
      %vm726 = vcmp.lt.s32.totalorder %v694, 256
      %vm727 = vcmp.lt.s32.totalorder %v695, 256
      %vm728 = vcmp.lt.s32.totalorder %v696, 256
      %vm729 = vcmp.lt.s32.totalorder %v697, 256
      %vm730 = vcmp.lt.s32.totalorder %v698, 256
      %vm731 = vcmp.lt.s32.totalorder %v699, 256
      %vm732 = vcmp.lt.s32.totalorder %v700, 256
      %v733 = vsel %vm701, 1, 0
      %v734 = vsel %vm702, 1, 0
      %v735 = vsel %vm703, 1, 0
      %v736 = vsel %vm704, 1, 0
      %v737 = vsel %vm705, 1, 0
      %v738 = vsel %vm706, 1, 0
      %v739 = vsel %vm707, 1, 0
      %v740 = vsel %vm708, 1, 0
      %v741 = vsel %vm709, 1, 0
      %v742 = vsel %vm710, 1, 0
      %v743 = vsel %vm711, 1, 0
      %v744 = vsel %vm712, 1, 0
      %v745 = vsel %vm713, 1, 0
      %v746 = vsel %vm714, 1, 0
      %v747 = vsel %vm715, 1, 0
      %v748 = vsel %vm716, 1, 0
      %v749 = vsel %vm717, 1, 0
      %v750 = vsel %vm718, 1, 0
      %v751 = vsel %vm719, 1, 0
      %v752 = vsel %vm720, 1, 0
      %v753 = vsel %vm721, 1, 0
      %v754 = vsel %vm722, 1, 0
      %v755 = vsel %vm723, 1, 0
      %v756 = vsel %vm724, 1, 0
      %v757 = vsel %vm725, 1, 0
      %v758 = vsel %vm726, 1, 0
      %v759 = vsel %vm727, 1, 0
      %v760 = vsel %vm728, 1, 0
      %v761 = vsel %vm729, 1, 0
      %v762 = vsel %vm730, 1, 0
      %v763 = vsel %vm731, 1, 0
      %v764 = vsel %vm732, 1, 0
      %vm765 = vcmp.eq.s32.totalorder %v733, 1
      %vm766 = vcmp.eq.s32.totalorder %v734, 1
      %vm767 = vcmp.eq.s32.totalorder %v735, 1
      %vm768 = vcmp.eq.s32.totalorder %v736, 1
      %vm769 = vcmp.eq.s32.totalorder %v737, 1
      %vm770 = vcmp.eq.s32.totalorder %v738, 1
      %vm771 = vcmp.eq.s32.totalorder %v739, 1
      %vm772 = vcmp.eq.s32.totalorder %v740, 1
      %vm773 = vcmp.eq.s32.totalorder %v741, 1
      %vm774 = vcmp.eq.s32.totalorder %v742, 1
      %vm775 = vcmp.eq.s32.totalorder %v743, 1
      %vm776 = vcmp.eq.s32.totalorder %v744, 1
      %vm777 = vcmp.eq.s32.totalorder %v745, 1
      %vm778 = vcmp.eq.s32.totalorder %v746, 1
      %vm779 = vcmp.eq.s32.totalorder %v747, 1
      %vm780 = vcmp.eq.s32.totalorder %v748, 1
      %vm781 = vcmp.eq.s32.totalorder %v749, 1
      %vm782 = vcmp.eq.s32.totalorder %v750, 1
      %vm783 = vcmp.eq.s32.totalorder %v751, 1
      %vm784 = vcmp.eq.s32.totalorder %v752, 1
      %vm785 = vcmp.eq.s32.totalorder %v753, 1
      %vm786 = vcmp.eq.s32.totalorder %v754, 1
      %vm787 = vcmp.eq.s32.totalorder %v755, 1
      %vm788 = vcmp.eq.s32.totalorder %v756, 1
      %vm789 = vcmp.eq.s32.totalorder %v757, 1
      %vm790 = vcmp.eq.s32.totalorder %v758, 1
      %vm791 = vcmp.eq.s32.totalorder %v759, 1
      %vm792 = vcmp.eq.s32.totalorder %v760, 1
      %vm793 = vcmp.eq.s32.totalorder %v761, 1
      %vm794 = vcmp.eq.s32.totalorder %v762, 1
      %vm795 = vcmp.eq.s32.totalorder %v763, 1
      %vm796 = vcmp.eq.s32.totalorder %v764, 1
      %v797 = vsel %vm765, %v476, 0.0
      %v798 = vsel %vm766, %v479, 0.0
      %v799 = vsel %vm767, %v484, 0.0
      %v800 = vsel %vm768, %v487, 0.0
      %v801 = vsel %vm769, %v492, 0.0
      %v802 = vsel %vm770, %v495, 0.0
      %v803 = vsel %vm771, %v500, 0.0
      %v804 = vsel %vm772, %v503, 0.0
      %v805 = vsel %vm773, %v508, 0.0
      %v806 = vsel %vm774, %v511, 0.0
      %v807 = vsel %vm775, %v516, 0.0
      %v808 = vsel %vm776, %v519, 0.0
      %v809 = vsel %vm777, %v524, 0.0
      %v810 = vsel %vm778, %v527, 0.0
      %v811 = vsel %vm779, %v532, 0.0
      %v812 = vsel %vm780, %v535, 0.0
      %v813 = vsel %vm781, %v540, 0.0
      %v814 = vsel %vm782, %v543, 0.0
      %v815 = vsel %vm783, %v548, 0.0
      %v816 = vsel %vm784, %v551, 0.0
      %v817 = vsel %vm785, %v556, 0.0
      %v818 = vsel %vm786, %v559, 0.0
      %v819 = vsel %vm787, %v564, 0.0
      %v820 = vsel %vm788, %v567, 0.0
      %v821 = vsel %vm789, %v572, 0.0
      %v822 = vsel %vm790, %v575, 0.0
      %v823 = vsel %vm791, %v580, 0.0
      %v824 = vsel %vm792, %v583, 0.0
      %v825 = vsel %vm793, %v588, 0.0
      %v826 = vsel %vm794, %v591, 0.0
      %v827 = vsel %vm795, %v596, 0.0
      %v828 = vsel %vm796, %v599, 0.0
      %v829 = vadd.f32 %v797, %v798
      %v830 = vadd.f32 %v829, %v799
      %v831 = vadd.f32 %v830, %v800
      %v832 = vadd.f32 %v831, %v801
      %v833 = vadd.f32 %v832, %v802
      %v834 = vadd.f32 %v833, %v803
      %v835 = vadd.f32 %v834, %v804
      %v836 = vadd.f32 %v835, %v805
      %v837 = vadd.f32 %v836, %v806
      %v838 = vadd.f32 %v837, %v807
      %v839 = vadd.f32 %v838, %v808
      %v840 = vadd.f32 %v839, %v809
      %v841 = vadd.f32 %v840, %v810
      %v842 = vadd.f32 %v841, %v811
      %v843 = vadd.f32 %v842, %v812
      %v844 = vadd.f32 %v843, %v813
      %v845 = vadd.f32 %v844, %v814
      %v846 = vadd.f32 %v845, %v815
      %v847 = vadd.f32 %v846, %v816
      %v848 = vadd.f32 %v847, %v817
      %v849 = vadd.f32 %v848, %v818
      %v850 = vadd.f32 %v849, %v819
      %v851 = vadd.f32 %v850, %v820
      %v852 = vadd.f32 %v851, %v821
      %v853 = vadd.f32 %v852, %v822
      %v854 = vadd.f32 %v853, %v823
      %v855 = vadd.f32 %v854, %v824
      %v856 = vadd.f32 %v855, %v825
      %v857 = vadd.f32 %v856, %v826
      %v858 = vadd.f32 %v857, %v827
      %v859 = vadd.f32 %v858, %v828
      %v860 = vrot.slane %v859, 4
      %v861 = vadd.f32 %v859, %v860
      %v862 = vrot.slane %v861, 2
      %v863 = vadd.f32 %v861, %v862
      %v864 = vrot.slane %v863, 1
      %v865 = vadd.f32 %v863, %v864
      %v866 = vmul.f32 %v797, %v797
      %v867 = vmul.f32 %v798, %v798
      %v868 = vmul.f32 %v799, %v799
      %v869 = vmul.f32 %v800, %v800
      %v870 = vmul.f32 %v801, %v801
      %v871 = vmul.f32 %v802, %v802
      %v872 = vmul.f32 %v803, %v803
      %v873 = vmul.f32 %v804, %v804
      %v874 = vmul.f32 %v805, %v805
      %v875 = vmul.f32 %v806, %v806
      %v876 = vmul.f32 %v807, %v807
      %v877 = vmul.f32 %v808, %v808
      %v878 = vmul.f32 %v809, %v809
      %v879 = vmul.f32 %v810, %v810
      %v880 = vmul.f32 %v811, %v811
      %v881 = vmul.f32 %v812, %v812
      %v882 = vmul.f32 %v813, %v813
      %v883 = vmul.f32 %v814, %v814
      %v884 = vmul.f32 %v815, %v815
      %v885 = vmul.f32 %v816, %v816
      %v886 = vmul.f32 %v817, %v817
      %v887 = vmul.f32 %v818, %v818
      %v888 = vmul.f32 %v819, %v819
      %v889 = vmul.f32 %v820, %v820
      %v890 = vmul.f32 %v821, %v821
      %v891 = vmul.f32 %v822, %v822
      %v892 = vmul.f32 %v823, %v823
      %v893 = vmul.f32 %v824, %v824
      %v894 = vmul.f32 %v825, %v825
      %v895 = vmul.f32 %v826, %v826
      %v896 = vmul.f32 %v827, %v827
      %v897 = vmul.f32 %v828, %v828
      %v898 = vadd.f32 %v866, %v867
      %v899 = vadd.f32 %v898, %v868
      %v900 = vadd.f32 %v899, %v869
      %v901 = vadd.f32 %v900, %v870
      %v902 = vadd.f32 %v901, %v871
      %v903 = vadd.f32 %v902, %v872
      %v904 = vadd.f32 %v903, %v873
      %v905 = vadd.f32 %v904, %v874
      %v906 = vadd.f32 %v905, %v875
      %v907 = vadd.f32 %v906, %v876
      %v908 = vadd.f32 %v907, %v877
      %v909 = vadd.f32 %v908, %v878
      %v910 = vadd.f32 %v909, %v879
      %v911 = vadd.f32 %v910, %v880
      %v912 = vadd.f32 %v911, %v881
      %v913 = vadd.f32 %v912, %v882
      %v914 = vadd.f32 %v913, %v883
      %v915 = vadd.f32 %v914, %v884
      %v916 = vadd.f32 %v915, %v885
      %v917 = vadd.f32 %v916, %v886
      %v918 = vadd.f32 %v917, %v887
      %v919 = vadd.f32 %v918, %v888
      %v920 = vadd.f32 %v919, %v889
      %v921 = vadd.f32 %v920, %v890
      %v922 = vadd.f32 %v921, %v891
      %v923 = vadd.f32 %v922, %v892
      %v924 = vadd.f32 %v923, %v893
      %v925 = vadd.f32 %v924, %v894
      %v926 = vadd.f32 %v925, %v895
      %v927 = vadd.f32 %v926, %v896
      %v928 = vadd.f32 %v927, %v897
      %v929 = vrot.slane %v928, 4
      %v930 = vadd.f32 %v928, %v929
      %v931 = vrot.slane %v930, 2
      %v932 = vadd.f32 %v930, %v931
      %v933 = vrot.slane %v932, 1
      %v934 = vadd.f32 %v932, %v933
      %vm935 = vcmask 1040384
      %v936 = vsel %vm935, %v865, %v934
      %p937 = scmp.eq.s32.totalorder %s21, 0
      // Predicated region
      $region33: #{cnl_forward.2} parent=31 // pred_check
        %p938 = pneg %p937
      $region34: #{cnl_forward.2} parent=31 // pred_check_branch
        %940 = sbr.rel (%p938) target = $region36
      $region35: #{cnl_forward.2} parent=31 // pred_region
        %941 = vst [vmem:[%s247] sm:$0x3] 0.0
      $region36: #{cnl_forward.2} parent=31 // pred_fallthru
        _
      %v942 = vld [vmem:[%s247] sm:$0x3]
      %v943 = vadd.f32 %v942, %v936
      %944 = vst [vmem:[%s247] sm:$0x3] %v943
      %s945 = smul.u32 32, %s21
      %p946 = scmp.lt.s32.totalorder %s20, 1
      %s947 = scalar_select %p946, %s20, 1
      %p948 = scmp.lt.s32.totalorder %s945, 31
      %s949 = scalar_select %p948, %s945, 31
      %s950 = smul.addr %s947, 32
      %s951 = sadd.s32 %s949, %s950
      %s952 = smul.addr %s951, 8
      %s953 = scalar_lea.vmem %s3, %s952
      %p954 = scmp.lt.s32.totalorder %s20, 1
      %s955 = scalar_select %p954, %s20, 1
      %s956 = smul.addr %s955, 2
      %s957 = scalar_lea.vmem %s4, %s956
      // Predicated region
      $region37: #{cnl_forward.2} parent=31 // pred_check
        %p958 = pneg %p118
      $region38: #{cnl_forward.2} parent=31 // pred_check_branch
        %960 = sbr.rel (%p958) target = $region40
      $region39: #{cnl_forward.2} parent=31 // pred_region
        %s961 = smul.u32 32, %s21
      $region40: #{cnl_forward.2} parent=31 // pred_fallthru
        _
      // Predicated region
      $region41: #{cnl_forward.2} parent=31 // pred_check
        %p962 = pneg %p144
      $region42: #{cnl_forward.2} parent=31 // pred_check_branch
        %964 = sbr.rel (%p962) target = $region44
      $region43: #{cnl_forward.2} parent=31 // pred_region
        _
      $region44: #{cnl_forward.2} parent=31 // pred_fallthru
        _
    $region32: #{cnl_forward.2} parent=5 // pred_fallthru
      _
    %p965 = scmp.le.s32.totalorder 2, %s11
    // Predicated region
    $region45: #{cnl_forward.2} parent=5 // pred_check
      %p966 = pneg %p965
    $region46: #{cnl_forward.2} parent=5 // pred_check_branch
      %968 = sbr.rel (%p966) target = $region48
    $region47: #{cnl_forward.2} parent=5 // pred_region
      %s969 = ssub.s32 %s11, 2
      // Predicated region
      $region49: #{cnl_forward.2} parent=47 // pred_check
        %p970 = pneg %p124
      $region50: #{cnl_forward.2} parent=47 // pred_check_branch
        %972 = sbr.rel (%p970) target = $region52
      $region51: #{cnl_forward.2} parent=47 // pred_region
        %s973 = smul.u32 32, %s23
        %p974 = scmp.lt.s32.totalorder %s22, 1
        %s975 = scalar_select %p974, %s22, 1
        %p976 = scmp.lt.s32.totalorder %s973, 31
        %s977 = scalar_select %p976, %s973, 31
        %s978 = smul.addr %s975, 32
        %s979 = sadd.s32 %s977, %s978
        %s980 = smul.addr %s979, 8
        %s981 = scalar_lea.vmem %s3, %s980
      $region52: #{cnl_forward.2} parent=47 // pred_fallthru
        _
      // Predicated region
      $region53: #{cnl_forward.2} parent=47 // pred_check
        %p982 = pneg %p150
      $region54: #{cnl_forward.2} parent=47 // pred_check_branch
        %984 = sbr.rel (%p982) target = $region56
      $region55: #{cnl_forward.2} parent=47 // pred_region
        %p985 = scmp.lt.s32.totalorder %s22, 1
        %s986 = scalar_select %p985, %s22, 1
        %s987 = smul.addr %s986, 2
        %s988 = scalar_lea.vmem %s4, %s987
      $region56: #{cnl_forward.2} parent=47 // pred_fallthru
        _
    $region48: #{cnl_forward.2} parent=5 // pred_fallthru
      _
  $region6: #{cnl_forward.2} parent=0 // loop_footer
    %s15 = sadd.s32 1, %s11
  $region7: #{cnl_forward.2} parent=0 // loop_footer_branch
    %10 = sbr.rel target = $region3
  $region8: #{cnl_forward.2} parent=0 // loop_exit
    _

</llo_original>
